<compile_context>
chip_gen: v6e
topology: v6e:2x2x1
jax: 0.10.0
libtpu: 0.0.40
codegen_flags: <defaults>
</compile_context>

<pallas_src>
import functools
import math

import jax
import jax.numpy as jnp
from jax.experimental import pallas as pl
from jax.experimental.pallas import tpu as pltpu

LN_EPS = 1e-12
INV_SQRT2 = 1.0 / math.sqrt(2.0)
# Explicit scoped-VMEM budget (review: v5e default 16 MiB can't hold BERT-base
# FFN weights; 48 MiB stays under v7x's 64 MiB physical VMEM).
VMEM_LIMIT_BYTES = 48 * 1024 * 1024


def _pick_tile(n, candidates):
    for t in candidates:
        if n % t == 0:
            return t
    return n  # ragged / tiny: single full block (equals full array dim)


# ---------------------------------------------------------------------------
# Kernel 1: fused multi-head attention (QKV proj + per-head softmax attention
# + output proj) + residual + LayerNorm  (BertSelfAttention + BertSelfOutput).
# grid = (B, Sq // tq), both axes "parallel".  Used for self- and cross-attn.
# ---------------------------------------------------------------------------
def _attention_kernel(q_ref, kv_ref, mask_ref,
                      wq_ref, bq_ref, wkv_ref, bkv_ref,
                      wo_ref, bo_ref, gamma_ref, beta_ref,
                      out_ref, *, num_heads, head_dim):
    hidden = num_heads * head_dim
    x = q_ref[0]                      # (tq, H)  f32: query + residual source
    kv = kv_ref[0]                    # (Skv, H) f32: key/value source
    mask = mask_ref[0]                # (1, Skv) additive mask (0 keep, -1e4 masked)

    # Projections: bf16 operands, f32 MXU accumulation.  Scale folded into q once.
    q = jnp.dot(x.astype(jnp.bfloat16), wq_ref[...],
                preferred_element_type=jnp.float32) + bq_ref[...]
    q = q * (1.0 / math.sqrt(head_dim))
    kvp = jnp.dot(kv.astype(jnp.bfloat16), wkv_ref[...],
                  preferred_element_type=jnp.float32) + bkv_ref[...]

    qb = q.astype(jnp.bfloat16)
    kb = kvp[:, :hidden].astype(jnp.bfloat16)
    vb = kvp[:, hidden:].astype(jnp.bfloat16)

    # Residual + output bias; per-head contexts accumulate straight into the
    # output projection (no lane-axis concat of head slices).
    acc = x + bo_ref[...]                                   # (tq, H) f32
    for h in range(num_heads):                              # static unroll
        lo = h * head_dim
        qh = qb[:, lo:lo + head_dim]                        # (tq, dh)
        kh = kb[:, lo:lo + head_dim]                        # (Skv, dh)
        vh = vb[:, lo:lo + head_dim]                        # (Skv, dh)
        s = jax.lax.dot_general(qh, kh, (((1,), (1,)), ((), ())),
                                preferred_element_type=jnp.float32)  # (tq, Skv)
        s = s + mask
        s = s - jnp.max(s, axis=-1, keepdims=True)
        e = jnp.exp(s)
        # Column-vector reciprocal (tq elements) instead of a full-tile divide.
        # (pl.reciprocal(..., approx=True) would move this to the EUP slot.)
        inv = 1.0 / jnp.sum(e, axis=-1, keepdims=True)
        p = e * inv
        ctx = jnp.dot(p.astype(jnp.bfloat16), vh,
                      preferred_element_type=jnp.float32)             # (tq, dh)
        acc = acc + jnp.dot(ctx.astype(jnp.bfloat16),
                            wo_ref[lo:lo + head_dim, :],
                            preferred_element_type=jnp.float32)       # (tq, H)

    # One-pass LayerNorm: center once, reuse for variance and normalization.
    mean = jnp.mean(acc, axis=-1, keepdims=True)
    c = acc - mean
    var = jnp.mean(c * c, axis=-1, keepdims=True)
    y = c * jax.lax.rsqrt(var + LN_EPS)
    out_ref[0] = (y * gamma_ref[...] + beta_ref[...]).astype(out_ref.dtype)


def attention_block(q_src, kv_src, mask, p, *, num_heads):
    """q_src: (B, Sq, H); kv_src: (B, Skv, H); mask: (B, Skv) additive."""
    B, Sq, H = q_src.shape
    _, Skv, _ = kv_src.shape
    assert H % num_heads == 0
    head_dim = H // num_heads
    # Large query-row tile so projection matmuls keep the MXU M-dim filled at
    # BERT-scale Sq, while still giving >1 parallel grid point when Sq is big.
    tq = _pick_tile(Sq, (512, 256, 128, 64, 32, 16, 8))

    mask3 = mask.reshape(B, 1, Skv).astype(jnp.float32)
    bf16 = lambda a: a.astype(jnp.bfloat16)
    row = lambda a: a.reshape(1, -1)
    wkv = bf16(jnp.concatenate([p["wk"], p["wv"]], axis=1))   # (H, 2H) fused K|V
    bkv = row(jnp.concatenate([p["bk"], p["bv"]]))            # (1, 2H) f32
    const = lambda shape: pl.BlockSpec(shape, lambda b, qi: (0, 0))

    kernel = functools.partial(_attention_kernel,
                               num_heads=num_heads, head_dim=head_dim)
    return pl.pallas_call(
        kernel,
        out_shape=jax.ShapeDtypeStruct((B, Sq, H), jnp.float32),
        grid=(B, Sq // tq),
        in_specs=[
            pl.BlockSpec((1, tq, H), lambda b, qi: (b, qi, 0)),    # query rows
            pl.BlockSpec((1, Skv, H), lambda b, qi: (b, 0, 0)),    # key/value src
            pl.BlockSpec((1, 1, Skv), lambda b, qi: (b, 0, 0)),    # additive mask
            const((H, H)), const((1, H)),          # Wq (bf16), bq (f32)
            const((H, 2 * H)), const((1, 2 * H)),  # W[k|v] fused (bf16), b[k|v]
            const((H, H)), const((1, H)),          # Wo (bf16), bo (f32)
            const((1, H)), const((1, H)),          # LN gamma, beta
        ],
        out_specs=pl.BlockSpec((1, tq, H), lambda b, qi: (b, qi, 0)),
        compiler_params=pltpu.CompilerParams(
            dimension_semantics=("parallel", "parallel"),
            vmem_limit_bytes=VMEM_LIMIT_BYTES),
    )(q_src, kv_src, mask3,
      bf16(p["wq"]), row(p["bq"]), wkv, bkv,
      bf16(p["wo"]), row(p["bo"]), row(p["gamma"]), row(p["beta"]))


# ---------------------------------------------------------------------------
# Kernel 2: fused FFN (BertIntermediate + BertOutput): dense + erf-gelu +
# dense + residual + LayerNorm.  grid = (row tiles, intermediate tiles); the
# intermediate axis is a reduction accumulated into a f32 VMEM scratch, so the
# W1/W2 tiles fit VMEM at BERT-base scale on v5e/v7x.
# ---------------------------------------------------------------------------
def _ffn_kernel(x_ref, w1_ref, b1_ref, w2_ref, b2_ref, gamma_ref, beta_ref,
                out_ref, acc_ref):
    k = pl.program_id(1)

    @pl.when(k == 0)
    def _():
        acc_ref[...] = jnp.zeros_like(acc_ref)

    x = x_ref[...]                                                   # (tm, H) f32
    y = jnp.dot(x.astype(jnp.bfloat16), w1_ref[...],
                preferred_element_type=jnp.float32) + b1_ref[...]
    y = y * 0.5 * (1.0 + jax.lax.erf(y * INV_SQRT2))                 # exact gelu
    acc_ref[...] += jnp.dot(y.astype(jnp.bfloat16), w2_ref[...],
                            preferred_element_type=jnp.float32)

    @pl.when(k == pl.num_programs(1) - 1)
    def _():
        z = acc_ref[...] + b2_ref[...] + x                           # residual
        mean = jnp.mean(z, axis=-1, keepdims=True)
        c = z - mean
        var = jnp.mean(c * c, axis=-1, keepdims=True)
        zn = c * jax.lax.rsqrt(var + LN_EPS)
        out_ref[...] = (zn * gamma_ref[...] + beta_ref[...]).astype(out_ref.dtype)


def ffn_block(x, p):
    B, S, H = x.shape
    inter = p["w1"].shape[1]
    M = B * S
    tm = _pick_tile(M, (1024, 512, 256, 128, 64, 32, 16, 8))
    tk = _pick_tile(inter, (2048, 1536, 1024, 768, 512, 384, 256, 128))
    x2d = x.reshape(M, H)
    bf16 = lambda a: a.astype(jnp.bfloat16)
    row = lambda a: a.reshape(1, -1)
    const = lambda shape: pl.BlockSpec(shape, lambda i, k: (0, 0))

    out = pl.pallas_call(
        _ffn_kernel,
        out_shape=jax.ShapeDtypeStruct((M, H), jnp.float32),
        grid=(M // tm, inter // tk),
        in_specs=[
            pl.BlockSpec((tm, H), lambda i, k: (i, 0)),   # token rows
            pl.BlockSpec((H, tk), lambda i, k: (0, k)),   # W1 tile (bf16)
            pl.BlockSpec((1, tk), lambda i, k: (0, k)),   # b1 tile (f32)
            pl.BlockSpec((tk, H), lambda i, k: (k, 0)),   # W2 tile (bf16)
            const((1, H)),                                # b2
            const((1, H)), const((1, H)),                 # LN gamma, beta
        ],
        out_specs=pl.BlockSpec((tm, H), lambda i, k: (i, 0)),
        scratch_shapes=[pltpu.VMEM((tm, H), jnp.float32)],
        compiler_params=pltpu.CompilerParams(
            dimension_semantics=("parallel", "arbitrary"),
            vmem_limit_bytes=VMEM_LIMIT_BYTES),
    )(x2d, bf16(p["w1"]), row(p["b1"]), bf16(p["w2"]), row(p["b2"]),
      row(p["gamma"]), row(p["beta"]))
    return out.reshape(B, S, H)


# ---------------------------------------------------------------------------
# Full BertCrossLayer forward
# ---------------------------------------------------------------------------
def bert_cross_layer(hidden_states, encoder_hidden_states,
                     attention_mask, encoder_attention_mask,
                     params, *, num_heads):
    # graph_sprels (if any) should be pre-added to attention_mask by the caller.
    h1 = attention_block(hidden_states, hidden_states, attention_mask,
                         params["self_attn"], num_heads=num_heads)
    h2 = attention_block(h1, encoder_hidden_states, encoder_attention_mask,
                         params["cross_attn"], num_heads=num_heads)
    return ffn_block(h2, params["ffn"])


# ---------------------------------------------------------------------------
# Parameters + pure-JAX references
# ---------------------------------------------------------------------------
def init_params(key, hidden, intermediate):
    # 26 keys are consumed; split plenty so the iterator never exhausts.
    ks = iter(jax.random.split(key, 40))

    def lin(din, dout, scale=0.05):
        return (scale * jax.random.normal(next(ks), (din, dout))).astype(jnp.float32)

    def vec(d, scale=0.02):
        return (scale * jax.random.normal(next(ks), (d,))).astype(jnp.float32)

    def attn():
        return {
            "wq": lin(hidden, hidden), "bq": vec(hidden),
            "wk": lin(hidden, hidden), "bk": vec(hidden),
            "wv": lin(hidden, hidden), "bv": vec(hidden),
            "wo": lin(hidden, hidden), "bo": vec(hidden),
            "gamma": 1.0 + vec(hidden), "beta": vec(hidden),
        }

    return {
        "self_attn": attn(),
        "cross_attn": attn(),
        "ffn": {
            "w1": lin(hidden, intermediate), "b1": vec(intermediate),
            "w2": lin(intermediate, hidden), "b2": vec(hidden),
            "gamma": 1.0 + vec(hidden), "beta": vec(hidden),
        },
    }


def _layernorm(x, gamma, beta):
    mean = jnp.mean(x, axis=-1, keepdims=True)
    c = x - mean
    var = jnp.mean(c * c, axis=-1, keepdims=True)
    return c * jax.lax.rsqrt(var + LN_EPS) * gamma + beta


def _mm(a, b, cast):
    return jnp.einsum("...k,kn->...n", cast(a), cast(b),
                      precision=jax.lax.Precision.HIGHEST,
                      preferred_element_type=jnp.float32)


def _attention_ref(xq, xkv, mask, p, num_heads, cast):
    B, Sq, H = xq.shape
    dh = H // num_heads
    q = (_mm(xq, p["wq"], cast) + p["bq"]) * (1.0 / math.sqrt(dh))
    k = _mm(xkv, p["wk"], cast) + p["bk"]
    v = _mm(xkv, p["wv"], cast) + p["bv"]

    def split(t):
        return t.reshape(t.shape[0], t.shape[1], num_heads, dh).transpose(0, 2, 1, 3)

    qh, kh, vh = split(q), split(k), split(v)
    s = jnp.einsum("bhqd,bhkd->bhqk", cast(qh), cast(kh),
                   precision=jax.lax.Precision.HIGHEST,
                   preferred_element_type=jnp.float32)
    s = s + mask[:, None, None, :]
    probs = jax.nn.softmax(s, axis=-1)
    ctx = jnp.einsum("bhqk,bhkd->bhqd", cast(probs), cast(vh),
                     precision=jax.lax.Precision.HIGHEST,
                     preferred_element_type=jnp.float32)
    ctx = ctx.transpose(0, 2, 1, 3).reshape(B, Sq, H)
    out = _mm(ctx, p["wo"], cast) + p["bo"] + xq
    return _layernorm(out, p["gamma"], p["beta"])


def _ffn_ref(x, p, cast):
    y = _mm(x, p["w1"], cast) + p["b1"]
    y = y * 0.5 * (1.0 + jax.lax.erf(y * INV_SQRT2))
    z = _mm(y, p["w2"], cast) + p["b2"] + x
    return _layernorm(z, p["gamma"], p["beta"])


def reference(hidden_states, encoder_hidden_states, attention_mask,
              encoder_attention_mask, params, num_heads, cast=lambda a: a):
    h1 = _attention_ref(hidden_states, hidden_states, attention_mask,
                        params["self_attn"], num_heads, cast)
    h2 = _attention_ref(h1, encoder_hidden_states, encoder_attention_mask,
                        params["cross_attn"], num_heads, cast)
    return _ffn_ref(h2, params["ffn"], cast)


if __name__ == "__main__":
    B, S_TXT, S_ENC, H, INTER, NH = 2, 8, 16, 128, 256, 4

    key = jax.random.PRNGKey(0)
    kx, ke, kp = jax.random.split(key, 3)
    hidden_states = jax.random.normal(kx, (B, S_TXT, H), dtype=jnp.float32)
    encoder_hidden_states = jax.random.normal(ke, (B, S_ENC, H), dtype=jnp.float32)

    # "Extended" additive masks (0 = attend, -10000 = masked).
    attention_mask = jnp.zeros((B, S_TXT), jnp.float32).at[1, -2:].set(-10000.0)
    encoder_attention_mask = jnp.zeros((B, S_ENC), jnp.float32).at[0, -5:].set(-10000.0)

    params = init_params(kp, H, INTER)

    out = bert_cross_layer(hidden_states, encoder_hidden_states,
                           attention_mask, encoder_attention_mask,
                           params, num_heads=NH)
    out = jax.block_until_ready(out)
    assert out.shape == (B, S_TXT, H)

    # Mixed-precision reference (same bf16 matmul operands as the kernel).
    ref_mixed = reference(hidden_states, encoder_hidden_states, attention_mask,
                          encoder_attention_mask, params, NH,
                          cast=lambda a: a.astype(jnp.bfloat16))
    err_mixed = float(jnp.max(jnp.abs(out - ref_mixed)))
    assert err_mixed < 1e-2, f"mixed-precision max abs err {err_mixed}"

    # Full-f32 module-semantics reference; loose bound covers bf16 matmuls.
    ref_f32 = reference(hidden_states, encoder_hidden_states, attention_mask,
                        encoder_attention_mask, params, NH)
    err_f32 = float(jnp.max(jnp.abs(out - ref_f32)))
    assert err_f32 < 1e-1, f"f32 max abs err {err_f32}"

    print("KERNEL_OK")
</pallas_src>

<mosaic_0001>
module attributes {stable_mosaic.version = 11 : i64} {
  func.func @_attention_kernel(%arg0: i32, %arg1: i32, %arg2: memref<1x8x128xf32, #tpu.memory_space<vmem>>, %arg3: memref<1x8x128xf32, #tpu.memory_space<vmem>>, %arg4: memref<1x1x8xf32, #tpu.memory_space<vmem>>, %arg5: memref<128x128xbf16, #tpu.memory_space<vmem>>, %arg6: memref<1x128xf32, #tpu.memory_space<vmem>>, %arg7: memref<128x256xbf16, #tpu.memory_space<vmem>>, %arg8: memref<1x256xf32, #tpu.memory_space<vmem>>, %arg9: memref<128x128xbf16, #tpu.memory_space<vmem>>, %arg10: memref<1x128xf32, #tpu.memory_space<vmem>>, %arg11: memref<1x128xf32, #tpu.memory_space<vmem>>, %arg12: memref<1x128xf32, #tpu.memory_space<vmem>>, %arg13: memref<1x8x128xf32, #tpu.memory_space<vmem>>) attributes {dimension_semantics = [#tpu.dimension_semantics<parallel>, #tpu.dimension_semantics<parallel>], iteration_bounds = array<i64: 2, 1>, scalar_prefetch = 0 : i64, scratch_operands = 0 : i64, tpu.core_type = #tpu.core_type<tc>, window_params = [{transform_indices = @transform_0, window_bounds = array<i64: 1, 8, 128>}, {transform_indices = @transform_1, window_bounds = array<i64: 1, 8, 128>}, {transform_indices = @transform_2, window_bounds = array<i64: 1, 1, 8>}, {pipeline_mode = #tpu.pipeline_mode<synchronous>, transform_indices = @transform_3, window_bounds = array<i64: 128, 128>}, {pipeline_mode = #tpu.pipeline_mode<synchronous>, transform_indices = @transform_4, window_bounds = array<i64: 1, 128>}, {pipeline_mode = #tpu.pipeline_mode<synchronous>, transform_indices = @transform_5, window_bounds = array<i64: 128, 256>}, {pipeline_mode = #tpu.pipeline_mode<synchronous>, transform_indices = @transform_6, window_bounds = array<i64: 1, 256>}, {pipeline_mode = #tpu.pipeline_mode<synchronous>, transform_indices = @transform_7, window_bounds = array<i64: 128, 128>}, {pipeline_mode = #tpu.pipeline_mode<synchronous>, transform_indices = @transform_8, window_bounds = array<i64: 1, 128>}, {pipeline_mode = #tpu.pipeline_mode<synchronous>, transform_indices = @transform_9, window_bounds = array<i64: 1, 128>}, {pipeline_mode = #tpu.pipeline_mode<synchronous>, transform_indices = @transform_10, window_bounds = array<i64: 1, 128>}, {transform_indices = @transform_11, window_bounds = array<i64: 1, 8, 128>}]} {
    %c0 = arith.constant 0 : index
    %c0_0 = arith.constant 0 : index
    %c0_1 = arith.constant 0 : index
    %0 = vector.load %arg2[%c0, %c0_0, %c0_1] : memref<1x8x128xf32, #tpu.memory_space<vmem>>, vector<1x8x128xf32>
    %1 = vector.shape_cast %0 : vector<1x8x128xf32> to vector<8x128xf32>
    %c0_2 = arith.constant 0 : index
    %c0_3 = arith.constant 0 : index
    %c0_4 = arith.constant 0 : index
    %2 = vector.load %arg3[%c0_2, %c0_3, %c0_4] : memref<1x8x128xf32, #tpu.memory_space<vmem>>, vector<1x8x128xf32>
    %3 = vector.shape_cast %2 : vector<1x8x128xf32> to vector<8x128xf32>
    %c0_5 = arith.constant 0 : index
    %c0_6 = arith.constant 0 : index
    %c0_7 = arith.constant 0 : index
    %4 = vector.load %arg4[%c0_5, %c0_6, %c0_7] : memref<1x1x8xf32, #tpu.memory_space<vmem>>, vector<1x1x8xf32>
    %5 = vector.shape_cast %4 : vector<1x1x8xf32> to vector<1x8xf32>
    %6 = arith.truncf %1 : vector<8x128xf32> to vector<8x128xbf16>
    %c0_8 = arith.constant 0 : index
    %c0_9 = arith.constant 0 : index
    %7 = vector.load %arg5[%c0_8, %c0_9] : memref<128x128xbf16, #tpu.memory_space<vmem>>, vector<128x128xbf16>
    %cst = arith.constant dense<0.000000e+00> : vector<8x128xf32>
    %8 = tpu.matmul %6, %7, %cst {dimension_numbers = #tpu.dot_dimension_numbers<[1], [0], [0], [1], [0, 0, 1, 1], [], []>} : vector<8x128xbf16>, vector<128x128xbf16>, vector<8x128xf32> -> vector<8x128xf32>
    %c0_10 = arith.constant 0 : index
    %c0_11 = arith.constant 0 : index
    %9 = vector.load %arg6[%c0_10, %c0_11] : memref<1x128xf32, #tpu.memory_space<vmem>>, vector<1x128xf32>
    %10 = vector.broadcast %9 : vector<1x128xf32> to vector<8x128xf32>
    %11 = arith.addf %8, %10 : vector<8x128xf32>
    %cst_12 = arith.constant 0.176776692 : f32
    %12 = vector.broadcast %cst_12 : f32 to vector<8x128xf32>
    %13 = arith.mulf %11, %12 : vector<8x128xf32>
    %14 = arith.truncf %3 : vector<8x128xf32> to vector<8x128xbf16>
    %c0_13 = arith.constant 0 : index
    %c0_14 = arith.constant 0 : index
    %15 = vector.load %arg7[%c0_13, %c0_14] : memref<128x256xbf16, #tpu.memory_space<vmem>>, vector<128x256xbf16>
    %cst_15 = arith.constant dense<0.000000e+00> : vector<8x256xf32>
    %16 = tpu.matmul %14, %15, %cst_15 {dimension_numbers = #tpu.dot_dimension_numbers<[1], [0], [0], [1], [0, 0, 1, 1], [], []>} : vector<8x128xbf16>, vector<128x256xbf16>, vector<8x256xf32> -> vector<8x256xf32>
    %c0_16 = arith.constant 0 : index
    %c0_17 = arith.constant 0 : index
    %17 = vector.load %arg8[%c0_16, %c0_17] : memref<1x256xf32, #tpu.memory_space<vmem>>, vector<1x256xf32>
    %18 = vector.broadcast %17 : vector<1x256xf32> to vector<8x256xf32>
    %19 = arith.addf %16, %18 : vector<8x256xf32>
    %20 = arith.truncf %13 : vector<8x128xf32> to vector<8x128xbf16>
    %21 = vector.extract_strided_slice %19 {offsets = [0, 0], sizes = [8, 128], strides = [1, 1]} : vector<8x256xf32> to vector<8x128xf32>
    %22 = arith.truncf %21 : vector<8x128xf32> to vector<8x128xbf16>
    %23 = vector.extract_strided_slice %19 {offsets = [0, 128], sizes = [8, 128], strides = [1, 1]} : vector<8x256xf32> to vector<8x128xf32>
    %24 = arith.truncf %23 : vector<8x128xf32> to vector<8x128xbf16>
    %c0_18 = arith.constant 0 : index
    %c0_19 = arith.constant 0 : index
    %25 = vector.load %arg10[%c0_18, %c0_19] : memref<1x128xf32, #tpu.memory_space<vmem>>, vector<1x128xf32>
    %26 = vector.broadcast %25 : vector<1x128xf32> to vector<8x128xf32>
    %27 = arith.addf %1, %26 : vector<8x128xf32>
    %28 = vector.extract_strided_slice %20 {offsets = [0, 0], sizes = [8, 32], strides = [1, 1]} : vector<8x128xbf16> to vector<8x32xbf16>
    %29 = vector.extract_strided_slice %22 {offsets = [0, 0], sizes = [8, 32], strides = [1, 1]} : vector<8x128xbf16> to vector<8x32xbf16>
    %30 = vector.extract_strided_slice %24 {offsets = [0, 0], sizes = [8, 32], strides = [1, 1]} : vector<8x128xbf16> to vector<8x32xbf16>
    %cst_20 = arith.constant dense<0.000000e+00> : vector<8x8xf32>
    %31 = tpu.matmul %28, %29, %cst_20 {dimension_numbers = #tpu.dot_dimension_numbers<[1], [1], [0], [0], [0, 0, 1, 0], [], []>} : vector<8x32xbf16>, vector<8x32xbf16>, vector<8x8xf32> -> vector<8x8xf32>
    %32 = vector.broadcast %5 : vector<1x8xf32> to vector<8x8xf32>
    %33 = arith.addf %31, %32 : vector<8x8xf32>
    %cst_21 = arith.constant dense<0xFF800000> : vector<8xf32>
    %34 = vector.multi_reduction <maximumf>, %33, %cst_21 [1] : vector<8x8xf32> to vector<8xf32>
    %35 = vector.shape_cast %34 : vector<8xf32> to vector<8x1xf32>
    %36 = vector.broadcast %35 : vector<8x1xf32> to vector<8x8xf32>
    %37 = arith.subf %33, %36 : vector<8x8xf32>
    %38 = math.exp %37 : vector<8x8xf32>
    %cst_22 = arith.constant dense<0.000000e+00> : vector<8xf32>
    %39 = vector.multi_reduction <add>, %38, %cst_22 [1] : vector<8x8xf32> to vector<8xf32>
    %40 = vector.shape_cast %39 : vector<8xf32> to vector<8x1xf32>
    %cst_23 = arith.constant 1.000000e+00 : f32
    %41 = vector.broadcast %cst_23 : f32 to vector<8x1xf32>
    %42 = arith.divf %41, %40 : vector<8x1xf32>
    %43 = vector.broadcast %42 : vector<8x1xf32> to vector<8x8xf32>
    %44 = arith.mulf %38, %43 : vector<8x8xf32>
    %45 = arith.truncf %44 : vector<8x8xf32> to vector<8x8xbf16>
    %cst_24 = arith.constant dense<0.000000e+00> : vector<8x32xf32>
    %46 = tpu.matmul %45, %30, %cst_24 {dimension_numbers = #tpu.dot_dimension_numbers<[1], [0], [0], [1], [0, 0, 1, 1], [], []>} : vector<8x8xbf16>, vector<8x32xbf16>, vector<8x32xf32> -> vector<8x32xf32>
    %47 = arith.truncf %46 : vector<8x32xf32> to vector<8x32xbf16>
    %c0_25 = arith.constant 0 : index
    %c0_26 = arith.constant 0 : index
    %48 = vector.load %arg9[%c0_25, %c0_26] : memref<128x128xbf16, #tpu.memory_space<vmem>>, vector<32x128xbf16>
    %cst_27 = arith.constant dense<0.000000e+00> : vector<8x128xf32>
    %49 = tpu.matmul %47, %48, %cst_27 {dimension_numbers = #tpu.dot_dimension_numbers<[1], [0], [0], [1], [0, 0, 1, 1], [], []>} : vector<8x32xbf16>, vector<32x128xbf16>, vector<8x128xf32> -> vector<8x128xf32>
    %50 = arith.addf %27, %49 : vector<8x128xf32>
    %51 = vector.extract_strided_slice %20 {offsets = [0, 32], sizes = [8, 32], strides = [1, 1]} : vector<8x128xbf16> to vector<8x32xbf16>
    %52 = vector.extract_strided_slice %22 {offsets = [0, 32], sizes = [8, 32], strides = [1, 1]} : vector<8x128xbf16> to vector<8x32xbf16>
    %53 = vector.extract_strided_slice %24 {offsets = [0, 32], sizes = [8, 32], strides = [1, 1]} : vector<8x128xbf16> to vector<8x32xbf16>
    %cst_28 = arith.constant dense<0.000000e+00> : vector<8x8xf32>
    %54 = tpu.matmul %51, %52, %cst_28 {dimension_numbers = #tpu.dot_dimension_numbers<[1], [1], [0], [0], [0, 0, 1, 0], [], []>} : vector<8x32xbf16>, vector<8x32xbf16>, vector<8x8xf32> -> vector<8x8xf32>
    %55 = vector.broadcast %5 : vector<1x8xf32> to vector<8x8xf32>
    %56 = arith.addf %54, %55 : vector<8x8xf32>
    %cst_29 = arith.constant dense<0xFF800000> : vector<8xf32>
    %57 = vector.multi_reduction <maximumf>, %56, %cst_29 [1] : vector<8x8xf32> to vector<8xf32>
    %58 = vector.shape_cast %57 : vector<8xf32> to vector<8x1xf32>
    %59 = vector.broadcast %58 : vector<8x1xf32> to vector<8x8xf32>
    %60 = arith.subf %56, %59 : vector<8x8xf32>
    %61 = math.exp %60 : vector<8x8xf32>
    %cst_30 = arith.constant dense<0.000000e+00> : vector<8xf32>
    %62 = vector.multi_reduction <add>, %61, %cst_30 [1] : vector<8x8xf32> to vector<8xf32>
    %63 = vector.shape_cast %62 : vector<8xf32> to vector<8x1xf32>
    %cst_31 = arith.constant 1.000000e+00 : f32
    %64 = vector.broadcast %cst_31 : f32 to vector<8x1xf32>
    %65 = arith.divf %64, %63 : vector<8x1xf32>
    %66 = vector.broadcast %65 : vector<8x1xf32> to vector<8x8xf32>
    %67 = arith.mulf %61, %66 : vector<8x8xf32>
    %68 = arith.truncf %67 : vector<8x8xf32> to vector<8x8xbf16>
    %cst_32 = arith.constant dense<0.000000e+00> : vector<8x32xf32>
    %69 = tpu.matmul %68, %53, %cst_32 {dimension_numbers = #tpu.dot_dimension_numbers<[1], [0], [0], [1], [0, 0, 1, 1], [], []>} : vector<8x8xbf16>, vector<8x32xbf16>, vector<8x32xf32> -> vector<8x32xf32>
    %70 = arith.truncf %69 : vector<8x32xf32> to vector<8x32xbf16>
    %c32 = arith.constant 32 : index
    %c0_33 = arith.constant 0 : index
    %71 = vector.load %arg9[%c32, %c0_33] : memref<128x128xbf16, #tpu.memory_space<vmem>>, vector<32x128xbf16>
    %cst_34 = arith.constant dense<0.000000e+00> : vector<8x128xf32>
    %72 = tpu.matmul %70, %71, %cst_34 {dimension_numbers = #tpu.dot_dimension_numbers<[1], [0], [0], [1], [0, 0, 1, 1], [], []>} : vector<8x32xbf16>, vector<32x128xbf16>, vector<8x128xf32> -> vector<8x128xf32>
    %73 = arith.addf %50, %72 : vector<8x128xf32>
    %74 = vector.extract_strided_slice %20 {offsets = [0, 64], sizes = [8, 32], strides = [1, 1]} : vector<8x128xbf16> to vector<8x32xbf16>
    %75 = vector.extract_strided_slice %22 {offsets = [0, 64], sizes = [8, 32], strides = [1, 1]} : vector<8x128xbf16> to vector<8x32xbf16>
    %76 = vector.extract_strided_slice %24 {offsets = [0, 64], sizes = [8, 32], strides = [1, 1]} : vector<8x128xbf16> to vector<8x32xbf16>
    %cst_35 = arith.constant dense<0.000000e+00> : vector<8x8xf32>
    %77 = tpu.matmul %74, %75, %cst_35 {dimension_numbers = #tpu.dot_dimension_numbers<[1], [1], [0], [0], [0, 0, 1, 0], [], []>} : vector<8x32xbf16>, vector<8x32xbf16>, vector<8x8xf32> -> vector<8x8xf32>
    %78 = vector.broadcast %5 : vector<1x8xf32> to vector<8x8xf32>
    %79 = arith.addf %77, %78 : vector<8x8xf32>
    %cst_36 = arith.constant dense<0xFF800000> : vector<8xf32>
    %80 = vector.multi_reduction <maximumf>, %79, %cst_36 [1] : vector<8x8xf32> to vector<8xf32>
    %81 = vector.shape_cast %80 : vector<8xf32> to vector<8x1xf32>
    %82 = vector.broadcast %81 : vector<8x1xf32> to vector<8x8xf32>
    %83 = arith.subf %79, %82 : vector<8x8xf32>
    %84 = math.exp %83 : vector<8x8xf32>
    %cst_37 = arith.constant dense<0.000000e+00> : vector<8xf32>
    %85 = vector.multi_reduction <add>, %84, %cst_37 [1] : vector<8x8xf32> to vector<8xf32>
    %86 = vector.shape_cast %85 : vector<8xf32> to vector<8x1xf32>
    %cst_38 = arith.constant 1.000000e+00 : f32
    %87 = vector.broadcast %cst_38 : f32 to vector<8x1xf32>
    %88 = arith.divf %87, %86 : vector<8x1xf32>
    %89 = vector.broadcast %88 : vector<8x1xf32> to vector<8x8xf32>
    %90 = arith.mulf %84, %89 : vector<8x8xf32>
    %91 = arith.truncf %90 : vector<8x8xf32> to vector<8x8xbf16>
    %cst_39 = arith.constant dense<0.000000e+00> : vector<8x32xf32>
    %92 = tpu.matmul %91, %76, %cst_39 {dimension_numbers = #tpu.dot_dimension_numbers<[1], [0], [0], [1], [0, 0, 1, 1], [], []>} : vector<8x8xbf16>, vector<8x32xbf16>, vector<8x32xf32> -> vector<8x32xf32>
    %93 = arith.truncf %92 : vector<8x32xf32> to vector<8x32xbf16>
    %c64 = arith.constant 64 : index
    %c0_40 = arith.constant 0 : index
    %94 = vector.load %arg9[%c64, %c0_40] : memref<128x128xbf16, #tpu.memory_space<vmem>>, vector<32x128xbf16>
    %cst_41 = arith.constant dense<0.000000e+00> : vector<8x128xf32>
    %95 = tpu.matmul %93, %94, %cst_41 {dimension_numbers = #tpu.dot_dimension_numbers<[1], [0], [0], [1], [0, 0, 1, 1], [], []>} : vector<8x32xbf16>, vector<32x128xbf16>, vector<8x128xf32> -> vector<8x128xf32>
    %96 = arith.addf %73, %95 : vector<8x128xf32>
    %97 = vector.extract_strided_slice %20 {offsets = [0, 96], sizes = [8, 32], strides = [1, 1]} : vector<8x128xbf16> to vector<8x32xbf16>
    %98 = vector.extract_strided_slice %22 {offsets = [0, 96], sizes = [8, 32], strides = [1, 1]} : vector<8x128xbf16> to vector<8x32xbf16>
    %99 = vector.extract_strided_slice %24 {offsets = [0, 96], sizes = [8, 32], strides = [1, 1]} : vector<8x128xbf16> to vector<8x32xbf16>
    %cst_42 = arith.constant dense<0.000000e+00> : vector<8x8xf32>
    %100 = tpu.matmul %97, %98, %cst_42 {dimension_numbers = #tpu.dot_dimension_numbers<[1], [1], [0], [0], [0, 0, 1, 0], [], []>} : vector<8x32xbf16>, vector<8x32xbf16>, vector<8x8xf32> -> vector<8x8xf32>
    %101 = vector.broadcast %5 : vector<1x8xf32> to vector<8x8xf32>
    %102 = arith.addf %100, %101 : vector<8x8xf32>
    %cst_43 = arith.constant dense<0xFF800000> : vector<8xf32>
    %103 = vector.multi_reduction <maximumf>, %102, %cst_43 [1] : vector<8x8xf32> to vector<8xf32>
    %104 = vector.shape_cast %103 : vector<8xf32> to vector<8x1xf32>
    %105 = vector.broadcast %104 : vector<8x1xf32> to vector<8x8xf32>
    %106 = arith.subf %102, %105 : vector<8x8xf32>
    %107 = math.exp %106 : vector<8x8xf32>
    %cst_44 = arith.constant dense<0.000000e+00> : vector<8xf32>
    %108 = vector.multi_reduction <add>, %107, %cst_44 [1] : vector<8x8xf32> to vector<8xf32>
    %109 = vector.shape_cast %108 : vector<8xf32> to vector<8x1xf32>
    %cst_45 = arith.constant 1.000000e+00 : f32
    %110 = vector.broadcast %cst_45 : f32 to vector<8x1xf32>
    %111 = arith.divf %110, %109 : vector<8x1xf32>
    %112 = vector.broadcast %111 : vector<8x1xf32> to vector<8x8xf32>
    %113 = arith.mulf %107, %112 : vector<8x8xf32>
    %114 = arith.truncf %113 : vector<8x8xf32> to vector<8x8xbf16>
    %cst_46 = arith.constant dense<0.000000e+00> : vector<8x32xf32>
    %115 = tpu.matmul %114, %99, %cst_46 {dimension_numbers = #tpu.dot_dimension_numbers<[1], [0], [0], [1], [0, 0, 1, 1], [], []>} : vector<8x8xbf16>, vector<8x32xbf16>, vector<8x32xf32> -> vector<8x32xf32>
    %116 = arith.truncf %115 : vector<8x32xf32> to vector<8x32xbf16>
    %c96 = arith.constant 96 : index
    %c0_47 = arith.constant 0 : index
    %117 = vector.load %arg9[%c96, %c0_47] : memref<128x128xbf16, #tpu.memory_space<vmem>>, vector<32x128xbf16>
    %cst_48 = arith.constant dense<0.000000e+00> : vector<8x128xf32>
    %118 = tpu.matmul %116, %117, %cst_48 {dimension_numbers = #tpu.dot_dimension_numbers<[1], [0], [0], [1], [0, 0, 1, 1], [], []>} : vector<8x32xbf16>, vector<32x128xbf16>, vector<8x128xf32> -> vector<8x128xf32>
    %119 = arith.addf %96, %118 : vector<8x128xf32>
    %cst_49 = arith.constant dense<0.000000e+00> : vector<8xf32>
    %120 = vector.multi_reduction <add>, %119, %cst_49 [1] : vector<8x128xf32> to vector<8xf32>
    %121 = vector.shape_cast %120 : vector<8xf32> to vector<8x1xf32>
    %cst_50 = arith.constant 1.280000e+02 : f32
    %122 = vector.broadcast %cst_50 : f32 to vector<8x1xf32>
    %123 = arith.divf %121, %122 : vector<8x1xf32>
    %124 = vector.broadcast %123 : vector<8x1xf32> to vector<8x128xf32>
    %125 = arith.subf %119, %124 : vector<8x128xf32>
    %126 = arith.mulf %125, %125 : vector<8x128xf32>
    %cst_51 = arith.constant dense<0.000000e+00> : vector<8xf32>
    %127 = vector.multi_reduction <add>, %126, %cst_51 [1] : vector<8x128xf32> to vector<8xf32>
    %128 = vector.shape_cast %127 : vector<8xf32> to vector<8x1xf32>
    %cst_52 = arith.constant 1.280000e+02 : f32
    %129 = vector.broadcast %cst_52 : f32 to vector<8x1xf32>
    %130 = arith.divf %128, %129 : vector<8x1xf32>
    %cst_53 = arith.constant 9.99999996E-13 : f32
    %131 = vector.broadcast %cst_53 : f32 to vector<8x1xf32>
    %132 = arith.addf %130, %131 : vector<8x1xf32>
    %133 = math.rsqrt %132 : vector<8x1xf32>
    %134 = vector.broadcast %133 : vector<8x1xf32> to vector<8x128xf32>
    %135 = arith.mulf %125, %134 : vector<8x128xf32>
    %c0_54 = arith.constant 0 : index
    %c0_55 = arith.constant 0 : index
    %136 = vector.load %arg11[%c0_54, %c0_55] : memref<1x128xf32, #tpu.memory_space<vmem>>, vector<1x128xf32>
    %137 = vector.broadcast %136 : vector<1x128xf32> to vector<8x128xf32>
    %138 = arith.mulf %135, %137 : vector<8x128xf32>
    %c0_56 = arith.constant 0 : index
    %c0_57 = arith.constant 0 : index
    %139 = vector.load %arg12[%c0_56, %c0_57] : memref<1x128xf32, #tpu.memory_space<vmem>>, vector<1x128xf32>
    %140 = vector.broadcast %139 : vector<1x128xf32> to vector<8x128xf32>
    %141 = arith.addf %138, %140 : vector<8x128xf32>
    %c0_58 = arith.constant 0 : index
    %c0_59 = arith.constant 0 : index
    %c0_60 = arith.constant 0 : index
    %142 = vector.load %arg13[%c0_58, %c0_59, %c0_60] : memref<1x8x128xf32, #tpu.memory_space<vmem>>, vector<1x8x128xf32>
    %143 = vector.shape_cast %142 : vector<1x8x128xf32> to vector<8x128xf32>
    %144 = vector.shape_cast %141 : vector<8x128xf32> to vector<1x8x128xf32>
    tpu.vector_store %arg13[%c0_58, %c0_59, %c0_60], %144 {strides = array<i32>} : memref<1x8x128xf32, #tpu.memory_space<vmem>>, vector<1x8x128xf32>,
    return
  }
  func.func @transform_0(%arg0: i32, %arg1: i32) -> (i32, i32, i32) {
    %c0_i32 = arith.constant 0 : i32
    %c0_i32_0 = arith.constant 0 : i32
    return %arg0, %arg1, %c0_i32 : i32, i32, i32
  }
  func.func @transform_1(%arg0: i32, %arg1: i32) -> (i32, i32, i32) {
    %c0_i32 = arith.constant 0 : i32
    %c0_i32_0 = arith.constant 0 : i32
    %c0_i32_1 = arith.constant 0 : i32
    return %arg0, %c0_i32, %c0_i32_0 : i32, i32, i32
  }
  func.func @transform_2(%arg0: i32, %arg1: i32) -> (i32, i32, i32) {
    %c0_i32 = arith.constant 0 : i32
    %c0_i32_0 = arith.constant 0 : i32
    %c0_i32_1 = arith.constant 0 : i32
    return %arg0, %c0_i32, %c0_i32_0 : i32, i32, i32
  }
  func.func @transform_3(%arg0: i32, %arg1: i32) -> (i32, i32) {
    %c0_i32 = arith.constant 0 : i32
    %c0_i32_0 = arith.constant 0 : i32
    %c0_i32_1 = arith.constant 0 : i32
    return %c0_i32, %c0_i32_0 : i32, i32
  }
  func.func @transform_4(%arg0: i32, %arg1: i32) -> (i32, i32) {
    %c0_i32 = arith.constant 0 : i32
    %c0_i32_0 = arith.constant 0 : i32
    %c0_i32_1 = arith.constant 0 : i32
    return %c0_i32, %c0_i32_0 : i32, i32
  }
  func.func @transform_5(%arg0: i32, %arg1: i32) -> (i32, i32) {
    %c0_i32 = arith.constant 0 : i32
    %c0_i32_0 = arith.constant 0 : i32
    %c0_i32_1 = arith.constant 0 : i32
    return %c0_i32, %c0_i32_0 : i32, i32
  }
  func.func @transform_6(%arg0: i32, %arg1: i32) -> (i32, i32) {
    %c0_i32 = arith.constant 0 : i32
    %c0_i32_0 = arith.constant 0 : i32
    %c0_i32_1 = arith.constant 0 : i32
    return %c0_i32, %c0_i32_0 : i32, i32
  }
  func.func @transform_7(%arg0: i32, %arg1: i32) -> (i32, i32) {
    %c0_i32 = arith.constant 0 : i32
    %c0_i32_0 = arith.constant 0 : i32
    %c0_i32_1 = arith.constant 0 : i32
    return %c0_i32, %c0_i32_0 : i32, i32
  }
  func.func @transform_8(%arg0: i32, %arg1: i32) -> (i32, i32) {
    %c0_i32 = arith.constant 0 : i32
    %c0_i32_0 = arith.constant 0 : i32
    %c0_i32_1 = arith.constant 0 : i32
    return %c0_i32, %c0_i32_0 : i32, i32
  }
  func.func @transform_9(%arg0: i32, %arg1: i32) -> (i32, i32) {
    %c0_i32 = arith.constant 0 : i32
    %c0_i32_0 = arith.constant 0 : i32
    %c0_i32_1 = arith.constant 0 : i32
    return %c0_i32, %c0_i32_0 : i32, i32
  }
  func.func @transform_10(%arg0: i32, %arg1: i32) -> (i32, i32) {
    %c0_i32 = arith.constant 0 : i32
    %c0_i32_0 = arith.constant 0 : i32
    %c0_i32_1 = arith.constant 0 : i32
    return %c0_i32, %c0_i32_0 : i32, i32
  }
  func.func @transform_11(%arg0: i32, %arg1: i32) -> (i32, i32, i32) {
    %c0_i32 = arith.constant 0 : i32
    %c0_i32_0 = arith.constant 0 : i32
    return %arg0, %arg1, %c0_i32 : i32, i32, i32
  }
}

</mosaic_0001>

<llo_original>
// kernel: tpu_custom_call.1
$region0: #{tpu_custom_call.1}
  #allocation0 [shape = 'u32[]', space=smem, size = 0x4, offset = 0x4, fixed_abs, tag = 'smem constant byte address 0x4 - core index']
  #allocation1 [shape = 'u32[144,128]{1,0:T(1,128)}', space=vmem, size = 0x12000, scoped, tag = 'internal scratch']
  %s0 = inlined_call_operand.hbm [shape: f32[2,8,128], index: 0, kind: input, shape index: {}]
  %s1 = inlined_call_operand.hbm [shape: f32[2,8,128], index: 1, kind: input, shape index: {}]
  %s2 = inlined_call_operand.vmem [shape: f32[2,1,8], index: 2, kind: input, shape index: {}]
  %s3 = inlined_call_operand.hbm [shape: bf16[128,128], index: 3, kind: input, shape index: {}]
  %s4 = inlined_call_operand.vmem [shape: f32[1,128], index: 4, kind: input, shape index: {}]
  %s5 = inlined_call_operand.hbm [shape: bf16[128,256], index: 5, kind: input, shape index: {}]
  %s6 = inlined_call_operand.vmem [shape: f32[1,256], index: 6, kind: input, shape index: {}]
  %s7 = inlined_call_operand.hbm [shape: bf16[128,128], index: 7, kind: input, shape index: {}]
  %s8 = inlined_call_operand.vmem [shape: f32[1,128], index: 8, kind: input, shape index: {}]
  %s9 = inlined_call_operand.vmem [shape: f32[1,128], index: 9, kind: input, shape index: {}]
  %s10 = inlined_call_operand.vmem [shape: f32[1,128], index: 10, kind: input, shape index: {}]
  %s11 = inlined_call_operand.hbm [shape: f32[2,8,128], index: 11, kind: output, shape index: {}]
  %s12 = sld [smem:[#allocation0]]
  $region97: #{tpu_custom_call.1} parent=0
    _
  %s14 = ssub.s32 1, %s12
  %s15 = scalar_select 0, %s14, %s12
  $region1: #{tpu_custom_call.1} parent=0
    #allocation2 [shape = 'u8[8192]{0}', space=vmem, size = 0x2000, scoped, tag = 'input window, operand 0']
    #allocation3 [shape = 's32[2]{0}', space=sflag, size = 0x8, scoped, tag = 'scoped memory for tpu_custom_call.1']
    #allocation4 [shape = 's32[2]{0}', space=sflag, size = 0x8, scoped, tag = 'scoped memory for tpu_custom_call.1']
    #allocation5 [shape = 'u8[8192]{0}', space=vmem, size = 0x2000, scoped, tag = 'input window, operand 1']
    #allocation6 [shape = 's32[2]{0}', space=sflag, size = 0x8, scoped, tag = 'scoped memory for tpu_custom_call.1']
    #allocation7 [shape = 'u8[32768]{0}', space=vmem, size = 0x8000, scoped, tag = 'input window, operand 3, single buffered']
    #allocation8 [shape = 'u8[65536]{0}', space=vmem, size = 0x10000, scoped, tag = 'input window, operand 5, single buffered']
    #allocation9 [shape = 's32[1]{0}', space=sflag, size = 0x4, scoped, tag = 'scoped memory for tpu_custom_call.1']
    #allocation10 [shape = 'u8[32768]{0}', space=vmem, size = 0x8000, scoped, tag = 'input window, operand 7, single buffered']
    #allocation11 [shape = 'u8[8192]{0}', space=vmem, size = 0x2000, scoped, tag = 'output window, operand 0']
    %16 = vsyncpa [#allocation3], 0
    %s17 = scalar_lea.sflag [#allocation3], 1
    %18 = vsyncpa %s17, 0
    %19 = vsyncpa [#allocation6], 0
    %s20 = scalar_lea.sflag [#allocation6], 1
    %21 = vsyncpa %s20, 0
    %22 = vsyncpa [#allocation9], 0
    %23 = vsyncpa [#allocation4], 0
    %s24 = scalar_lea.sflag [#allocation4], 1
    %25 = vsyncpa %s24, 0
    loop: start=0, step=1, limit=4
    $region2: #{tpu_custom_call.1} parent=1 // loop_pre_header
      _
    $region3: #{tpu_custom_call.1} parent=1 // loop_header
      %s27 = sphi 0, %s31
      %p28 = scmp.ge.s32.totalorder %s27, 4
      %s34 = sphi 0, %s46
      %s35 = sphi 0, %s42
      %s36 = sphi 0, %s34
      %s37 = sphi 0, %s35
      %s38 = sphi 0, %s36
      %s39 = sphi 0, %s37
      %s51 = sphi 0, %s53
      %s54 = sphi 0, %s51
      %s55 = sphi 0, %s54
      %s71 = sphi 0, %s55
      %s77 = sphi 0, %s79
      %s80 = sphi 0, %s77
      %s81 = sphi 0, %s80
      %s97 = sphi 0, %s81
      %s103 = sphi 0, %s105
      %s106 = sphi 0, %s103
      %s107 = sphi 0, %s106
      %s123 = sphi 0, %s107
      %s127 = sphi 0, %s127
      %s129 = sphi 0, %s127
      %s130 = sphi 0, %s129
      %s144 = sphi 0, %s130
      %s148 = sphi 0, %s148
      %s150 = sphi 0, %s148
      %s151 = sphi 0, %s150
      %s165 = sphi 0, %s151
      %s169 = sphi 0, %s169
      %s171 = sphi 0, %s169
      %s172 = sphi 0, %s171
      %s186 = sphi 0, %s172
      %s190 = sphi 0, %s190
      %s192 = sphi 0, %s190
      %s193 = sphi 0, %s192
      %s207 = sphi 0, %s193
      %s211 = sphi 0, %s211
      %s213 = sphi 0, %s211
      %s214 = sphi 0, %s213
      %s228 = sphi 0, %s214
      %s232 = sphi 0, %s232
      %s234 = sphi 0, %s232
      %s235 = sphi 0, %s234
      %s249 = sphi 0, %s235
      %s253 = sphi 0, %s253
      %s255 = sphi 0, %s253
      %s256 = sphi 0, %s255
      %s270 = sphi 0, %s256
      %s274 = sphi 0, %s274
      %s276 = sphi 0, %s274
      %s277 = sphi 0, %s276
      %s291 = sphi 0, %s277
      %s299 = sphi 0, %s301
      %s302 = sphi 0, %s299
      %s303 = sphi 0, %s302
      %s319 = sphi 0, %s303
    $region4: #{tpu_custom_call.1} parent=1 // loop_header_branch
      %30 = sbr.rel (%p28) target = $region8
    $region5: #{tpu_custom_call.1} parent=1 // loop_body
      %s32 = ssub.s32 %s27, 1
      %s33 = ssub.s32 %s27, 2
      %s40 = sadd.s32 1, %s35
      %p41 = scmp.ge.s32.totalorder %s40, 1
      %s42 = scalar_select %p41, 0, %s40
      %s43 = sadd.s32 1, %s34
      %s44 = scalar_select %p41, %s43, %s34
      %p45 = scmp.ge.s32.totalorder %s44, 2
      %s46 = scalar_select %p45, 0, %s44
      %s47 = ssub.s32 %s34, %s46
      %s48 = ssub.s32 %s35, %s42
      %s49 = sor.u32 %s47, %s48
      %p50 = scmp.eq.s32.totalorder %s49, 0
      %s52 = sadd.s32 %s51, 1
      %s53 = scalar_select %p50, %s51, %s52
      %p56 = pneg %p50
      %p57 = scmp.eq.s32.totalorder %s27, 1
      %p58 = por %p56, %p57
      %p59 = scmp.ne.s32.totalorder %s51, %s54
      %p60 = scmp.eq.s32.totalorder %s27, 0
      %p61 = por %p59, %p60
      %p62 = scmp.ne.s32.totalorder %s51, %s54
      %p63 = scmp.eq.s32.totalorder %s32, 1
      %p64 = por %p62, %p63
      %p65 = scmp.ne.s32.totalorder %s54, %s55
      %p66 = scmp.eq.s32.totalorder %s32, 0
      %p67 = por %p65, %p66
      %p68 = scmp.ne.s32.totalorder %s54, %s55
      %p69 = scmp.eq.s32.totalorder %s33, 1
      %p70 = por %p68, %p69
      %p72 = scmp.ne.s32.totalorder %s55, %s71
      %p73 = scmp.eq.s32.totalorder %s33, 0
      %p74 = por %p72, %p73
      %s75 = ssub.s32 %s34, %s46
      %p76 = scmp.eq.s32.totalorder %s75, 0
      %s78 = sadd.s32 %s77, 1
      %s79 = scalar_select %p76, %s77, %s78
      %p82 = pneg %p76
      %p83 = scmp.eq.s32.totalorder %s27, 1
      %p84 = por %p82, %p83
      %p85 = scmp.ne.s32.totalorder %s77, %s80
      %p86 = scmp.eq.s32.totalorder %s27, 0
      %p87 = por %p85, %p86
      %p88 = scmp.ne.s32.totalorder %s77, %s80
      %p89 = scmp.eq.s32.totalorder %s32, 1
      %p90 = por %p88, %p89
      %p91 = scmp.ne.s32.totalorder %s80, %s81
      %p92 = scmp.eq.s32.totalorder %s32, 0
      %p93 = por %p91, %p92
      %p94 = scmp.ne.s32.totalorder %s80, %s81
      %p95 = scmp.eq.s32.totalorder %s33, 1
      %p96 = por %p94, %p95
      %p98 = scmp.ne.s32.totalorder %s81, %s97
      %p99 = scmp.eq.s32.totalorder %s33, 0
      %p100 = por %p98, %p99
      %s101 = ssub.s32 %s34, %s46
      %p102 = scmp.eq.s32.totalorder %s101, 0
      %s104 = sadd.s32 %s103, 1
      %s105 = scalar_select %p102, %s103, %s104
      %p108 = pneg %p102
      %p109 = scmp.eq.s32.totalorder %s27, 1
      %p110 = por %p108, %p109
      %p111 = scmp.ne.s32.totalorder %s103, %s106
      %p112 = scmp.eq.s32.totalorder %s27, 0
      %p113 = por %p111, %p112
      %p114 = scmp.ne.s32.totalorder %s103, %s106
      %p115 = scmp.eq.s32.totalorder %s32, 1
      %p116 = por %p114, %p115
      %p117 = scmp.ne.s32.totalorder %s106, %s107
      %p118 = scmp.eq.s32.totalorder %s32, 0
      %p119 = por %p117, %p118
      %p120 = scmp.ne.s32.totalorder %s106, %s107
      %p121 = scmp.eq.s32.totalorder %s33, 1
      %p122 = por %p120, %p121
      %p124 = scmp.ne.s32.totalorder %s107, %s123
      %p125 = scmp.eq.s32.totalorder %s33, 0
      %p126 = por %p124, %p125
      %s128 = sadd.s32 %s127, 1
      %p131 = scmp.eq.s32.totalorder %s27, 1
      %p132 = scmp.ne.s32.totalorder %s127, %s129
      %p133 = scmp.eq.s32.totalorder %s27, 0
      %p134 = por %p132, %p133
      %p135 = scmp.ne.s32.totalorder %s127, %s129
      %p136 = scmp.eq.s32.totalorder %s32, 1
      %p137 = por %p135, %p136
      %p138 = scmp.ne.s32.totalorder %s129, %s130
      %p139 = scmp.eq.s32.totalorder %s32, 0
      %p140 = por %p138, %p139
      %p141 = scmp.ne.s32.totalorder %s129, %s130
      %p142 = scmp.eq.s32.totalorder %s33, 1
      %p143 = por %p141, %p142
      %p145 = scmp.ne.s32.totalorder %s130, %s144
      %p146 = scmp.eq.s32.totalorder %s33, 0
      %p147 = por %p145, %p146
      %s149 = sadd.s32 %s148, 1
      %p152 = scmp.eq.s32.totalorder %s27, 1
      %p153 = scmp.ne.s32.totalorder %s148, %s150
      %p154 = scmp.eq.s32.totalorder %s27, 0
      %p155 = por %p153, %p154
      %p156 = scmp.ne.s32.totalorder %s148, %s150
      %p157 = scmp.eq.s32.totalorder %s32, 1
      %p158 = por %p156, %p157
      %p159 = scmp.ne.s32.totalorder %s150, %s151
      %p160 = scmp.eq.s32.totalorder %s32, 0
      %p161 = por %p159, %p160
      %p162 = scmp.ne.s32.totalorder %s150, %s151
      %p163 = scmp.eq.s32.totalorder %s33, 1
      %p164 = por %p162, %p163
      %p166 = scmp.ne.s32.totalorder %s151, %s165
      %p167 = scmp.eq.s32.totalorder %s33, 0
      %p168 = por %p166, %p167
      %s170 = sadd.s32 %s169, 1
      %p173 = scmp.eq.s32.totalorder %s27, 1
      %p174 = scmp.ne.s32.totalorder %s169, %s171
      %p175 = scmp.eq.s32.totalorder %s27, 0
      %p176 = por %p174, %p175
      %p177 = scmp.ne.s32.totalorder %s169, %s171
      %p178 = scmp.eq.s32.totalorder %s32, 1
      %p179 = por %p177, %p178
      %p180 = scmp.ne.s32.totalorder %s171, %s172
      %p181 = scmp.eq.s32.totalorder %s32, 0
      %p182 = por %p180, %p181
      %p183 = scmp.ne.s32.totalorder %s171, %s172
      %p184 = scmp.eq.s32.totalorder %s33, 1
      %p185 = por %p183, %p184
      %p187 = scmp.ne.s32.totalorder %s172, %s186
      %p188 = scmp.eq.s32.totalorder %s33, 0
      %p189 = por %p187, %p188
      %s191 = sadd.s32 %s190, 1
      %p194 = scmp.eq.s32.totalorder %s27, 1
      %p195 = scmp.ne.s32.totalorder %s190, %s192
      %p196 = scmp.eq.s32.totalorder %s27, 0
      %p197 = por %p195, %p196
      %p198 = scmp.ne.s32.totalorder %s190, %s192
      %p199 = scmp.eq.s32.totalorder %s32, 1
      %p200 = por %p198, %p199
      %p201 = scmp.ne.s32.totalorder %s192, %s193
      %p202 = scmp.eq.s32.totalorder %s32, 0
      %p203 = por %p201, %p202
      %p204 = scmp.ne.s32.totalorder %s192, %s193
      %p205 = scmp.eq.s32.totalorder %s33, 1
      %p206 = por %p204, %p205
      %p208 = scmp.ne.s32.totalorder %s193, %s207
      %p209 = scmp.eq.s32.totalorder %s33, 0
      %p210 = por %p208, %p209
      %s212 = sadd.s32 %s211, 1
      %p215 = scmp.eq.s32.totalorder %s27, 1
      %p216 = scmp.ne.s32.totalorder %s211, %s213
      %p217 = scmp.eq.s32.totalorder %s27, 0
      %p218 = por %p216, %p217
      %p219 = scmp.ne.s32.totalorder %s211, %s213
      %p220 = scmp.eq.s32.totalorder %s32, 1
      %p221 = por %p219, %p220
      %p222 = scmp.ne.s32.totalorder %s213, %s214
      %p223 = scmp.eq.s32.totalorder %s32, 0
      %p224 = por %p222, %p223
      %p225 = scmp.ne.s32.totalorder %s213, %s214
      %p226 = scmp.eq.s32.totalorder %s33, 1
      %p227 = por %p225, %p226
      %p229 = scmp.ne.s32.totalorder %s214, %s228
      %p230 = scmp.eq.s32.totalorder %s33, 0
      %p231 = por %p229, %p230
      %s233 = sadd.s32 %s232, 1
      %p236 = scmp.eq.s32.totalorder %s27, 1
      %p237 = scmp.ne.s32.totalorder %s232, %s234
      %p238 = scmp.eq.s32.totalorder %s27, 0
      %p239 = por %p237, %p238
      %p240 = scmp.ne.s32.totalorder %s232, %s234
      %p241 = scmp.eq.s32.totalorder %s32, 1
      %p242 = por %p240, %p241
      %p243 = scmp.ne.s32.totalorder %s234, %s235
      %p244 = scmp.eq.s32.totalorder %s32, 0
      %p245 = por %p243, %p244
      %p246 = scmp.ne.s32.totalorder %s234, %s235
      %p247 = scmp.eq.s32.totalorder %s33, 1
      %p248 = por %p246, %p247
      %p250 = scmp.ne.s32.totalorder %s235, %s249
      %p251 = scmp.eq.s32.totalorder %s33, 0
      %p252 = por %p250, %p251
      %s254 = sadd.s32 %s253, 1
      %p257 = scmp.eq.s32.totalorder %s27, 1
      %p258 = scmp.ne.s32.totalorder %s253, %s255
      %p259 = scmp.eq.s32.totalorder %s27, 0
      %p260 = por %p258, %p259
      %p261 = scmp.ne.s32.totalorder %s253, %s255
      %p262 = scmp.eq.s32.totalorder %s32, 1
      %p263 = por %p261, %p262
      %p264 = scmp.ne.s32.totalorder %s255, %s256
      %p265 = scmp.eq.s32.totalorder %s32, 0
      %p266 = por %p264, %p265
      %p267 = scmp.ne.s32.totalorder %s255, %s256
      %p268 = scmp.eq.s32.totalorder %s33, 1
      %p269 = por %p267, %p268
      %p271 = scmp.ne.s32.totalorder %s256, %s270
      %p272 = scmp.eq.s32.totalorder %s33, 0
      %p273 = por %p271, %p272
      %s275 = sadd.s32 %s274, 1
      %p278 = scmp.eq.s32.totalorder %s27, 1
      %p279 = scmp.ne.s32.totalorder %s274, %s276
      %p280 = scmp.eq.s32.totalorder %s27, 0
      %p281 = por %p279, %p280
      %p282 = scmp.ne.s32.totalorder %s274, %s276
      %p283 = scmp.eq.s32.totalorder %s32, 1
      %p284 = por %p282, %p283
      %p285 = scmp.ne.s32.totalorder %s276, %s277
      %p286 = scmp.eq.s32.totalorder %s32, 0
      %p287 = por %p285, %p286
      %p288 = scmp.ne.s32.totalorder %s276, %s277
      %p289 = scmp.eq.s32.totalorder %s33, 1
      %p290 = por %p288, %p289
      %p292 = scmp.ne.s32.totalorder %s277, %s291
      %p293 = scmp.eq.s32.totalorder %s33, 0
      %p294 = por %p292, %p293
      %s295 = ssub.s32 %s34, %s46
      %s296 = ssub.s32 %s35, %s42
      %s297 = sor.u32 %s295, %s296
      %p298 = scmp.eq.s32.totalorder %s297, 0
      %s300 = sadd.s32 %s299, 1
      %s301 = scalar_select %p298, %s299, %s300
      %p304 = pneg %p298
      %p305 = scmp.eq.s32.totalorder %s27, 1
      %p306 = por %p304, %p305
      %p307 = scmp.ne.s32.totalorder %s299, %s302
      %p308 = scmp.eq.s32.totalorder %s27, 0
      %p309 = por %p307, %p308
      %p310 = scmp.ne.s32.totalorder %s299, %s302
      %p311 = scmp.eq.s32.totalorder %s32, 1
      %p312 = por %p310, %p311
      %p313 = scmp.ne.s32.totalorder %s302, %s303
      %p314 = scmp.eq.s32.totalorder %s32, 0
      %p315 = por %p313, %p314
      %p316 = scmp.ne.s32.totalorder %s302, %s303
      %p317 = scmp.eq.s32.totalorder %s33, 1
      %p318 = por %p316, %p317
      %p320 = scmp.ne.s32.totalorder %s303, %s319
      %p321 = scmp.eq.s32.totalorder %s33, 0
      %p322 = por %p320, %p321
      %p323 = scmp.le.s32.totalorder 1, %s27
      %p324 = scmp.lt.s32.totalorder %s27, 3
      %p325 = pnand %p323, %p324
      %p326 = pneg %p325
      // Predicated region
      $region9: #{tpu_custom_call.1} parent=5 // pred_check
        _
      $region10: #{tpu_custom_call.1} parent=5 // pred_check_branch
        %328 = sbr.rel (%p325) target = $region12
      $region11: #{tpu_custom_call.1} parent=5 // pred_region
        %s329 = ssub.s32 %s27, 1
        // Predicated region
        $region13: #{tpu_custom_call.1} parent=11 // pred_check
          %p330 = pneg %p140
        $region14: #{tpu_custom_call.1} parent=11 // pred_check_branch
          %332 = sbr.rel (%p330) target = $region16
        $region15: #{tpu_custom_call.1} parent=11 // pred_region
          %s334 = ssub.s32 1024, 1024
          %335 = vsyncadd [#allocation6], %s334
          %s336 = sshll.u32 [#allocation7], 4
          %s337 = int_to_ptr.vmem [resolvable:$true] %s336
          %342 = dma.hbm_to_vmem [thread:$0]  %s3, 1024, %s337, [#allocation6], 64, 64, 4
        $region16: #{tpu_custom_call.1} parent=11 // pred_fallthru
          _
        // Predicated region
        $region17: #{tpu_custom_call.1} parent=11 // pred_check
          %p343 = pneg %p161
        $region18: #{tpu_custom_call.1} parent=11 // pred_check_branch
          %345 = sbr.rel (%p343) target = $region20
        $region19: #{tpu_custom_call.1} parent=11 // pred_region
          _
        $region20: #{tpu_custom_call.1} parent=11 // pred_fallthru
          _
        // Predicated region
        $region21: #{tpu_custom_call.1} parent=11 // pred_check
          %p346 = pneg %p182
        $region22: #{tpu_custom_call.1} parent=11 // pred_check_branch
          %348 = sbr.rel (%p346) target = $region24
        $region23: #{tpu_custom_call.1} parent=11 // pred_region
          %s350 = ssub.s32 2048, 2048
          %351 = vsyncadd [#allocation9], %s350
          %s352 = sshll.u32 [#allocation8], 4
          %s353 = int_to_ptr.vmem [resolvable:$true] %s352
          %358 = dma.hbm_to_vmem [thread:$0]  %s5, 2048, %s353, [#allocation9], 128, 128, 8
        $region24: #{tpu_custom_call.1} parent=11 // pred_fallthru
          _
        // Predicated region
        $region25: #{tpu_custom_call.1} parent=11 // pred_check
          %p359 = pneg %p203
        $region26: #{tpu_custom_call.1} parent=11 // pred_check_branch
          %361 = sbr.rel (%p359) target = $region28
        $region27: #{tpu_custom_call.1} parent=11 // pred_region
          _
        $region28: #{tpu_custom_call.1} parent=11 // pred_fallthru
          _
        // Predicated region
        $region29: #{tpu_custom_call.1} parent=11 // pred_check
          %p362 = pneg %p224
        $region30: #{tpu_custom_call.1} parent=11 // pred_check_branch
          %364 = sbr.rel (%p362) target = $region32
        $region31: #{tpu_custom_call.1} parent=11 // pred_region
          %s366 = ssub.s32 1024, 1024
          %367 = vsyncadd [#allocation9], %s366
          %s368 = sshll.u32 [#allocation10], 4
          %s369 = int_to_ptr.vmem [resolvable:$true] %s368
          %374 = dma.hbm_to_vmem [thread:$0]  %s7, 1024, %s369, [#allocation9], 64, 64, 4
        $region32: #{tpu_custom_call.1} parent=11 // pred_fallthru
          _
        // Predicated region
        $region33: #{tpu_custom_call.1} parent=11 // pred_check
          %p375 = pneg %p245
        $region34: #{tpu_custom_call.1} parent=11 // pred_check_branch
          %377 = sbr.rel (%p375) target = $region36
        $region35: #{tpu_custom_call.1} parent=11 // pred_region
          _
        $region36: #{tpu_custom_call.1} parent=11 // pred_fallthru
          _
        // Predicated region
        $region37: #{tpu_custom_call.1} parent=11 // pred_check
          %p378 = pneg %p266
        $region38: #{tpu_custom_call.1} parent=11 // pred_check_branch
          %380 = sbr.rel (%p378) target = $region40
        $region39: #{tpu_custom_call.1} parent=11 // pred_region
          _
        $region40: #{tpu_custom_call.1} parent=11 // pred_fallthru
          _
        // Predicated region
        $region41: #{tpu_custom_call.1} parent=11 // pred_check
          %p381 = pneg %p287
        $region42: #{tpu_custom_call.1} parent=11 // pred_check_branch
          %383 = sbr.rel (%p381) target = $region44
        $region43: #{tpu_custom_call.1} parent=11 // pred_region
          _
        $region44: #{tpu_custom_call.1} parent=11 // pred_fallthru
          _
      $region12: #{tpu_custom_call.1} parent=5 // pred_fallthru
        _
      %p384 = scmp.lt.s32.totalorder %s27, 2
      // Predicated region
      $region45: #{tpu_custom_call.1} parent=5 // pred_check
        %p385 = pneg %p384
      $region46: #{tpu_custom_call.1} parent=5 // pred_check_branch
        %387 = sbr.rel (%p385) target = $region48
      $region47: #{tpu_custom_call.1} parent=5 // pred_region
        // Predicated region
        $region49: #{tpu_custom_call.1} parent=47 // pred_check
          %p388 = pneg %p61
        $region50: #{tpu_custom_call.1} parent=47 // pred_check_branch
          %390 = sbr.rel (%p388) target = $region52
        $region51: #{tpu_custom_call.1} parent=47 // pred_region
          %s391 = sand.u32 %s51, 1
          %s392 = scalar_lea.sflag [#allocation3], %s391
          %s393 = sand.u32 %s51, 1
          %s394 = smul.addr %s393, 8
          %s395 = scalar_lea.vmem [#allocation2], %s394
          %s397 = ssub.s32 128, 128
          %398 = vsyncadd %s392, %s397
          %s399 = sadd.s32 %s35, %s34
          %s400 = smul.addr %s399, 128
          %s401 = scalar_lea.hbm %s0, %s400
          %s403 = sshll.u32 %s395, 4
          %s404 = int_to_ptr.vmem [resolvable:$true] %s403
          %406 = dma.hbm_to_vmem [thread:$0]  %s401, 128, %s404, %s392
        $region52: #{tpu_custom_call.1} parent=47 // pred_fallthru
          _
        // Predicated region
        $region53: #{tpu_custom_call.1} parent=47 // pred_check
          %p407 = pneg %p87
        $region54: #{tpu_custom_call.1} parent=47 // pred_check_branch
          %409 = sbr.rel (%p407) target = $region56
        $region55: #{tpu_custom_call.1} parent=47 // pred_region
          %s410 = sand.u32 %s27, 1
          %s411 = scalar_lea.sflag [#allocation6], %s410
          %s412 = sand.u32 %s77, 1
          %s413 = smul.addr %s412, 8
          %s414 = scalar_lea.vmem [#allocation5], %s413
          %s416 = ssub.s32 128, 128
          %417 = vsyncadd %s411, %s416
          %s418 = smul.addr %s34, 128
          %s419 = scalar_lea.hbm %s1, %s418
          %s421 = sshll.u32 %s414, 4
          %s422 = int_to_ptr.vmem [resolvable:$true] %s421
          %424 = dma.hbm_to_vmem [thread:$0]  %s419, 128, %s422, %s411
        $region56: #{tpu_custom_call.1} parent=47 // pred_fallthru
          _
        // Predicated region
        $region57: #{tpu_custom_call.1} parent=47 // pred_check
          %p425 = pneg %p113
        $region58: #{tpu_custom_call.1} parent=47 // pred_check_branch
          %427 = sbr.rel (%p425) target = $region60
        $region59: #{tpu_custom_call.1} parent=47 // pred_region
          %p428 = scmp.lt.s32.totalorder %s34, 1
          %s429 = scalar_select %p428, %s34, 1
          %s430 = scalar_lea.vmem %s2, %s429
        $region60: #{tpu_custom_call.1} parent=47 // pred_fallthru
          _
      $region48: #{tpu_custom_call.1} parent=5 // pred_fallthru
        _
      %p431 = scmp.le.s32.totalorder 1, %s27
      %p432 = scmp.lt.s32.totalorder %s27, 3
      %p433 = pnand %p431, %p432
      %p434 = pneg %p433
      // Predicated region
      $region61: #{tpu_custom_call.1} parent=5 // pred_check
        _
      $region62: #{tpu_custom_call.1} parent=5 // pred_check_branch
        %436 = sbr.rel (%p433) target = $region64
      $region63: #{tpu_custom_call.1} parent=5 // pred_region
        %s437 = ssub.s32 %s27, 1
        %s438 = sand.u32 %s54, 1
        %s439 = scalar_lea.sflag [#allocation3], %s438
        %s440 = sand.u32 %s54, 1
        %s441 = smul.addr %s440, 8
        %s442 = scalar_lea.vmem [#allocation2], %s441
        // Predicated region
        $region65: #{tpu_custom_call.1} parent=63 // pred_check
          %p443 = pneg %p67
        $region66: #{tpu_custom_call.1} parent=63 // pred_check_branch
          %445 = sbr.rel (%p443) target = $region68
        $region67: #{tpu_custom_call.1} parent=63 // pred_region
          %446 = dma.done %s439, 128
        $region68: #{tpu_custom_call.1} parent=63 // pred_fallthru
          _
        %s447 = sand.u32 %s32, 1
        %s448 = scalar_lea.sflag [#allocation6], %s447
        %s449 = sand.u32 %s80, 1
        %s450 = smul.addr %s449, 8
        %s451 = scalar_lea.vmem [#allocation5], %s450
        // Predicated region
        $region69: #{tpu_custom_call.1} parent=63 // pred_check
          %p452 = pneg %p93
        $region70: #{tpu_custom_call.1} parent=63 // pred_check_branch
          %454 = sbr.rel (%p452) target = $region72
        $region71: #{tpu_custom_call.1} parent=63 // pred_region
          %455 = dma.done %s448, 128
        $region72: #{tpu_custom_call.1} parent=63 // pred_fallthru
          _
        // Predicated region
        $region73: #{tpu_custom_call.1} parent=63 // pred_check
          %p456 = pneg %p140
        $region74: #{tpu_custom_call.1} parent=63 // pred_check_branch
          %458 = sbr.rel (%p456) target = $region76
        $region75: #{tpu_custom_call.1} parent=63 // pred_region
          %459 = dma.done [#allocation6], 1024
        $region76: #{tpu_custom_call.1} parent=63 // pred_fallthru
          _
        // Predicated region
        $region77: #{tpu_custom_call.1} parent=63 // pred_check
          %p460 = pneg %p182
        $region78: #{tpu_custom_call.1} parent=63 // pred_check_branch
          %462 = sbr.rel (%p460) target = $region80
        $region79: #{tpu_custom_call.1} parent=63 // pred_region
          %463 = dma.done [#allocation9], 2048
        $region80: #{tpu_custom_call.1} parent=63 // pred_fallthru
          _
        // Predicated region
        $region81: #{tpu_custom_call.1} parent=63 // pred_check
          %p464 = pneg %p224
        $region82: #{tpu_custom_call.1} parent=63 // pred_check_branch
          %466 = sbr.rel (%p464) target = $region84
        $region83: #{tpu_custom_call.1} parent=63 // pred_region
          %467 = dma.done [#allocation9], 1024
        $region84: #{tpu_custom_call.1} parent=63 // pred_fallthru
          _
        %s468 = sand.u32 %s54, 1
        %s469 = scalar_lea.sflag [#allocation3], %s468
        %s470 = sand.u32 %s54, 1
        %s471 = smul.addr %s470, 8
        %s472 = scalar_lea.vmem [#allocation2], %s471
        %p473 = pneg %p67
        %p474 = pneg %p64
        %s475 = sand.u32 %s32, 1
        %s476 = scalar_lea.sflag [#allocation6], %s475
        %s477 = sand.u32 %s80, 1
        %s478 = smul.addr %s477, 8
        %s479 = scalar_lea.vmem [#allocation5], %s478
        %p480 = pneg %p93
        %p481 = pneg %p90
        %p482 = scmp.lt.s32.totalorder %s36, 1
        %s483 = scalar_select %p482, %s36, 1
        %s484 = scalar_lea.vmem %s2, %s483
        %p485 = pneg %p119
        %p486 = pneg %p116
        %p487 = pneg %p140
        %p488 = pneg %p137
        %p489 = pneg %p161
        %p490 = pneg %p158
        %p491 = pneg %p182
        %p492 = pneg %p179
        %p493 = pneg %p203
        %p494 = pneg %p200
        %p495 = pneg %p224
        %p496 = pneg %p221
        %p497 = pneg %p245
        %p498 = pneg %p242
        %p499 = pneg %p266
        %p500 = pneg %p263
        %p501 = pneg %p287
        %p502 = pneg %p284
        %p503 = pneg %p315
        %p504 = pneg %p312
        %s505 = sand.u32 %s302, 1
        %s506 = scalar_lea.sflag [#allocation4], %s505
        %s507 = sand.u32 %s302, 1
        %s508 = smul.addr %s507, 8
        %s509 = scalar_lea.vmem [#allocation11], %s508
        %p510 = scmp.lt.s32.totalorder %s36, 1
        %s511 = scalar_select %p510, %s36, 1
        %s512 = scalar_lea.vmem %s2, %s511
        %v514 = vld [vmem:[%s442] sm:$0xff]
        %v515 = vld [vmem:[%s451] sm:$0xff]
        %v516 = vld [vmem:[%s512] sm:$0x1]
        %v517 = vpack.c.bf16 %v514, %v514
        %v518 = vld [vmem:[#allocation7] sm:$0xf]
        %v519 = vld [vmem:[#allocation7 + $0x4] sm:$0xf]
        %v520 = vld [vmem:[#allocation7 + $0x8] sm:$0xf]
        %v521 = vld [vmem:[#allocation7 + $0xc] sm:$0xf]
        %v522 = vld [vmem:[#allocation7 + $0x10] sm:$0xf]
        %v523 = vld [vmem:[#allocation7 + $0x14] sm:$0xf]
        %v524 = vld [vmem:[#allocation7 + $0x18] sm:$0xf]
        %v525 = vld [vmem:[#allocation7 + $0x1c] sm:$0xf]
        %v526 = vld [vmem:[#allocation7 + $0x20] sm:$0xf]
        %v527 = vld [vmem:[#allocation7 + $0x24] sm:$0xf]
        %v528 = vld [vmem:[#allocation7 + $0x28] sm:$0xf]
        %v529 = vld [vmem:[#allocation7 + $0x2c] sm:$0xf]
        %v530 = vld [vmem:[#allocation7 + $0x30] sm:$0xf]
        %v531 = vld [vmem:[#allocation7 + $0x34] sm:$0xf]
        %v532 = vld [vmem:[#allocation7 + $0x38] sm:$0xf]
        %v533 = vld [vmem:[#allocation7 + $0x3c] sm:$0xf]
        %v534 = vld [vmem:[%s4] sm:$0x1]
        %v536 = vlaneseq
        %v537 = vshrl.u32 %v536, 7
        %v538 = vsub.s32 0, %v537
        %v539 = vrot.slane %v534, %v538
        %v557 = vunpack.c.l.b16 %v518
        %v558 = vunpack.c.l.b16 %v519
        %v559 = vunpack.c.l.b16 %v520
        %v560 = vunpack.c.l.b16 %v521
        %v561 = vunpack.c.l.b16 %v522
        %v562 = vunpack.c.l.b16 %v523
        %v563 = vunpack.c.l.b16 %v524
        %v564 = vunpack.c.l.b16 %v525
        %v565 = vunpack.c.l.b16 %v526
        %v566 = vunpack.c.l.b16 %v527
        %v567 = vunpack.c.l.b16 %v528
        %v568 = vunpack.c.l.b16 %v529
        %v569 = vunpack.c.l.b16 %v530
        %v570 = vunpack.c.l.b16 %v531
        %v571 = vunpack.c.l.b16 %v532
        %v572 = vunpack.c.l.b16 %v533
        %v573 = vpack.c.b16 %v558, %v557
        %v574 = vpack.c.b16 %v560, %v559
        %v575 = vpack.c.b16 %v562, %v561
        %v576 = vpack.c.b16 %v564, %v563
        %v577 = vpack.c.b16 %v566, %v565
        %v578 = vpack.c.b16 %v568, %v567
        %v579 = vpack.c.b16 %v570, %v569
        %v580 = vpack.c.b16 %v572, %v571
        %589 = vmatprep.subr.bf16.mxu0 0
        %590 = vmatpush1.bf16.msra.mxu0 %v580
        %591 = vmatprep.subr.bf16.mxu0 0
        %592 = vmatpush1.bf16.msra.mxu0 %v579
        %593 = vmatprep.subr.bf16.mxu0 0
        %594 = vmatpush1.bf16.msra.mxu0 %v578
        %595 = vmatprep.subr.bf16.mxu0 0
        %596 = vmatpush1.bf16.msra.mxu0 %v577
        %597 = vmatprep.subr.bf16.mxu0 0
        %598 = vmatpush1.bf16.msra.mxu0 %v576
        %599 = vmatprep.subr.bf16.mxu0 0
        %600 = vmatpush1.bf16.msra.mxu0 %v575
        %601 = vmatprep.subr.bf16.mxu0 0
        %602 = vmatpush1.bf16.msra.mxu0 %v574
        %603 = vmatprep.subr.bf16.mxu0 0
        %604 = vmatpush1.bf16.msra.mxu0 %v573
        %605 = vmatprep.subr.bf16.mxu0 0
        %606 = vmatpush2.bf16.msra.mxu0 0
        %607 = vmatprep.subr.bf16.mxu0 0
        %608 = vmatpush2.bf16.msra.mxu0 0
        %609 = vmatprep.subr.bf16.mxu0 0
        %610 = vmatpush2.bf16.msra.mxu0 0
        %611 = vmatprep.subr.bf16.mxu0 0
        %612 = vmatpush2.bf16.msra.mxu0 0
        %613 = vmatprep.subr.bf16.mxu0 0
        %614 = vmatpush2.bf16.msra.mxu0 0
        %615 = vmatprep.subr.bf16.mxu0 0
        %616 = vmatpush2.bf16.msra.mxu0 0
        %617 = vmatprep.subr.bf16.mxu0 0
        %618 = vmatpush2.bf16.msra.mxu0 0
        %619 = vmatprep.subr.bf16.mxu0 0
        %620 = vmatpush2.bf16.msra.mxu0 0
        %621 = vmatprep.mubr.bf16.mxu0 0
        %622 = vmatmul.mubr.bf16.gmra.mxu0 %v517
        %v623 = vpop.f32.mrf.mxu0
        %v624 = vadd.f32 %v539, %v623
        %v625 = vpop.f32.mrf.mxu0
        %v626 = vpop.f32.mrf.mxu0
        %v627 = vpop.f32.mrf.mxu0
        %628 = vdwg.mxu0
        %v629 = vmul.f32 %v624, 0.17677669
        %v630 = vpack.c.bf16 %v515, %v515
        %v631 = vld [vmem:[#allocation8] sm:$0xff]
        %v632 = vld [vmem:[#allocation8 + $0x8] sm:$0xff]
        %v633 = vld [vmem:[#allocation8 + $0x10] sm:$0xff]
        %v634 = vld [vmem:[#allocation8 + $0x18] sm:$0xff]
        %v635 = vld [vmem:[#allocation8 + $0x20] sm:$0xff]
        %v636 = vld [vmem:[#allocation8 + $0x28] sm:$0xff]
        %v637 = vld [vmem:[#allocation8 + $0x30] sm:$0xff]
        %v638 = vld [vmem:[#allocation8 + $0x38] sm:$0xff]
        %v639 = vld [vmem:[#allocation8 + $0x40] sm:$0xff]
        %v640 = vld [vmem:[#allocation8 + $0x48] sm:$0xff]
        %v641 = vld [vmem:[#allocation8 + $0x50] sm:$0xff]
        %v642 = vld [vmem:[#allocation8 + $0x58] sm:$0xff]
        %v643 = vld [vmem:[#allocation8 + $0x60] sm:$0xff]
        %v644 = vld [vmem:[#allocation8 + $0x68] sm:$0xff]
        %v645 = vld [vmem:[#allocation8 + $0x70] sm:$0xff]
        %v646 = vld [vmem:[#allocation8 + $0x78] sm:$0xff]
        %v647 = vld [vmem:[%s6] sm:$0x3]
        %v649 = vlaneseq
        %v650 = vshrl.u32 %v649, 7
        %v651 = vsub.s32 0, %v650
        %v652 = vrot.slane %v647, %v651
        %v653 = vlaneseq
        %v654 = vshrl.u32 %v653, 7
        %v655 = vsub.s32 1, %v654
        %v656 = vrot.slane %v647, %v655
        %v675 = vunpack.c.l.b16 %v631
        %v676 = vunpack.c.h.b16 %v631
        %v677 = vunpack.c.l.b16 %v632
        %v678 = vunpack.c.h.b16 %v632
        %v679 = vunpack.c.l.b16 %v633
        %v680 = vunpack.c.h.b16 %v633
        %v681 = vunpack.c.l.b16 %v634
        %v682 = vunpack.c.h.b16 %v634
        %v683 = vunpack.c.l.b16 %v635
        %v684 = vunpack.c.h.b16 %v635
        %v685 = vunpack.c.l.b16 %v636
        %v686 = vunpack.c.h.b16 %v636
        %v687 = vunpack.c.l.b16 %v637
        %v688 = vunpack.c.h.b16 %v637
        %v689 = vunpack.c.l.b16 %v638
        %v690 = vunpack.c.h.b16 %v638
        %v691 = vunpack.c.l.b16 %v639
        %v692 = vunpack.c.h.b16 %v639
        %v693 = vunpack.c.l.b16 %v640
        %v694 = vunpack.c.h.b16 %v640
        %v695 = vunpack.c.l.b16 %v641
        %v696 = vunpack.c.h.b16 %v641
        %v697 = vunpack.c.l.b16 %v642
        %v698 = vunpack.c.h.b16 %v642
        %v699 = vunpack.c.l.b16 %v643
        %v700 = vunpack.c.h.b16 %v643
        %v701 = vunpack.c.l.b16 %v644
        %v702 = vunpack.c.h.b16 %v644
        %v703 = vunpack.c.l.b16 %v645
        %v704 = vunpack.c.h.b16 %v645
        %v705 = vunpack.c.l.b16 %v646
        %v706 = vunpack.c.h.b16 %v646
        %v707 = vpack.c.b16 %v677, %v675
        %v708 = vpack.c.b16 %v678, %v676
        %v709 = vpack.c.b16 %v681, %v679
        %v710 = vpack.c.b16 %v682, %v680
        %v711 = vpack.c.b16 %v685, %v683
        %v712 = vpack.c.b16 %v686, %v684
        %v713 = vpack.c.b16 %v689, %v687
        %v714 = vpack.c.b16 %v690, %v688
        %v715 = vpack.c.b16 %v693, %v691
        %v716 = vpack.c.b16 %v694, %v692
        %v717 = vpack.c.b16 %v697, %v695
        %v718 = vpack.c.b16 %v698, %v696
        %v719 = vpack.c.b16 %v701, %v699
        %v720 = vpack.c.b16 %v702, %v700
        %v721 = vpack.c.b16 %v705, %v703
        %v722 = vpack.c.b16 %v706, %v704
        %739 = vmatprep.subr.bf16.mxu0 %v722
        %740 = vmatpush1.bf16.msra.mxu0 %v721
        %741 = vmatprep.subr.bf16.mxu0 %v720
        %742 = vmatpush1.bf16.msra.mxu0 %v719
        %743 = vmatprep.subr.bf16.mxu0 %v718
        %744 = vmatpush1.bf16.msra.mxu0 %v717
        %745 = vmatprep.subr.bf16.mxu0 %v716
        %746 = vmatpush1.bf16.msra.mxu0 %v715
        %747 = vmatprep.subr.bf16.mxu0 %v714
        %748 = vmatpush1.bf16.msra.mxu0 %v713
        %749 = vmatprep.subr.bf16.mxu0 %v712
        %750 = vmatpush1.bf16.msra.mxu0 %v711
        %751 = vmatprep.subr.bf16.mxu0 %v710
        %752 = vmatpush1.bf16.msra.mxu0 %v709
        %753 = vmatprep.subr.bf16.mxu0 %v708
        %754 = vmatpush1.bf16.msra.mxu0 %v707
        %755 = vmatprep.subr.bf16.mxu0 0
        %756 = vmatpush2.bf16.msra.mxu0 0
        %757 = vmatprep.subr.bf16.mxu0 0
        %758 = vmatpush2.bf16.msra.mxu0 0
        %759 = vmatprep.subr.bf16.mxu0 0
        %760 = vmatpush2.bf16.msra.mxu0 0
        %761 = vmatprep.subr.bf16.mxu0 0
        %762 = vmatpush2.bf16.msra.mxu0 0
        %763 = vmatprep.subr.bf16.mxu0 0
        %764 = vmatpush2.bf16.msra.mxu0 0
        %765 = vmatprep.subr.bf16.mxu0 0
        %766 = vmatpush2.bf16.msra.mxu0 0
        %767 = vmatprep.subr.bf16.mxu0 0
        %768 = vmatpush2.bf16.msra.mxu0 0
        %769 = vmatprep.subr.bf16.mxu0 0
        %770 = vmatpush2.bf16.msra.mxu0 0
        %771 = vmatprep.mubr.bf16.mxu0 0
        %772 = vmatmul.mubr.bf16.gmra.mxu0 %v630
        %v773 = vpop.f32.mrf.mxu0
        %v774 = vadd.f32 %v652, %v773
        %v775 = vpop.f32.mrf.mxu0
        %v776 = vadd.f32 %v656, %v775
        %v777 = vpop.f32.mrf.mxu0
        %v778 = vpop.f32.mrf.mxu0
        %779 = vdwg.mxu0
        %v780 = vpack.c.bf16 %v629, %v629
        %v781 = vpack.c.bf16 %v774, %v774
        %v782 = vpack.c.bf16 %v776, %v776
        %v783 = vld [vmem:[%s8] sm:$0x1]
        %v785 = vlaneseq
        %v786 = vshrl.u32 %v785, 7
        %v787 = vsub.s32 0, %v786
        %v788 = vrot.slane %v783, %v787
        %v790 = vadd.f32 %v514, %v788
        %v792 = vlaneseq
        %v793 = vshrl.u32 %v792, 7
        %v794 = vsub.s32 0, %v793
        %v795 = vrot.slane %v516, %v794
        %vm797 = vcmask 261120
        %v799 = vsel %vm797, %v780, 0
        %v802 = vsel %vm797, %v781, 0
        %804 = vmatprep.subr.bf16.mxu0 0
        %805 = vmatpush1.bf16.xpose.msra.mxu0 0
        %806 = vmatprep.subr.bf16.mxu0 0
        %807 = vmatpush1.bf16.xpose.msra.mxu0 0
        %808 = vmatprep.subr.bf16.mxu0 0
        %809 = vmatpush1.bf16.xpose.msra.mxu0 0
        %810 = vmatprep.subr.bf16.mxu0 0
        %811 = vmatpush1.bf16.xpose.msra.mxu0 0
        %812 = vmatprep.subr.bf16.mxu0 0
        %813 = vmatpush1.bf16.xpose.msra.mxu0 0
        %814 = vmatprep.subr.bf16.mxu0 0
        %815 = vmatpush1.bf16.xpose.msra.mxu0 0
        %816 = vmatprep.subr.bf16.mxu0 0
        %817 = vmatpush1.bf16.xpose.msra.mxu0 0
        %818 = vmatprep.subr.bf16.mxu0 0
        %819 = vmatpush1.bf16.xpose.msra.mxu0 %v802
        %820 = vmatprep.subr.bf16.mxu0 0
        %821 = vmatpush2.bf16.xpose.msra.mxu0 0
        %822 = vmatprep.subr.bf16.mxu0 0
        %823 = vmatpush2.bf16.xpose.msra.mxu0 0
        %824 = vmatprep.subr.bf16.mxu0 0
        %825 = vmatpush2.bf16.xpose.msra.mxu0 0
        %826 = vmatprep.subr.bf16.mxu0 0
        %827 = vmatpush2.bf16.xpose.msra.mxu0 0
        %828 = vmatprep.subr.bf16.mxu0 0
        %829 = vmatpush2.bf16.xpose.msra.mxu0 0
        %830 = vmatprep.subr.bf16.mxu0 0
        %831 = vmatpush2.bf16.xpose.msra.mxu0 0
        %832 = vmatprep.subr.bf16.mxu0 0
        %833 = vmatpush2.bf16.xpose.msra.mxu0 0
        %834 = vmatprep.subr.bf16.mxu0 0
        %835 = vmatpush2.bf16.xpose.msra.mxu0 0
        %836 = vmatprep.mubr.bf16.mxu0 0
        %837 = vmatmul.mubr.bf16.gmra.mxu0 %v799
        %v838 = vpop.f32.mrf.mxu0
        %v839 = vadd.f32 %v795, %v838
        %v840 = vpop.f32.mrf.mxu0
        %v841 = vpop.f32.mrf.mxu0
        %v842 = vpop.f32.mrf.mxu0
        %843 = vdwg.mxu0
        %vm844 = vcmask 64512
        %v845 = vsel %vm844, %v839, -inf
        %846 = vmax.xlane.f32.xlu0 %v845
        %v847 = vpop.xlane.xlu0 %846
        %v848 = vsub.f32 %v839, %v847
        %v849 = vmul.f32 %v848, 1.442695
        %v850 = vpow.pop %v849
        %v851 = vsel %vm844, %v850, 0.0
        %852 = vadd.xlane.f32.xlu0 %v851
        %v853 = vpop.xlane.xlu0 %852
        %v854 = vrcp.pop %v853
        %v855 = vmul.f32 1.0, %v854
        %v856 = vmul.f32 %v850, %v855
        %v857 = vpack.c.bf16 %v856, %v856
        %v859 = vsel %vm844, %v857, 0
        %vm861 = vcmask 1043456
        %v863 = vsel %vm861, %v782, 0
        %865 = vmatprep.subr.bf16.mxu0 0
        %866 = vmatpush1.bf16.msra.mxu0 0
        %867 = vmatprep.subr.bf16.mxu0 0
        %868 = vmatpush1.bf16.msra.mxu0 0
        %869 = vmatprep.subr.bf16.mxu0 0
        %870 = vmatpush1.bf16.msra.mxu0 0
        %871 = vmatprep.subr.bf16.mxu0 0
        %872 = vmatpush1.bf16.msra.mxu0 0
        %873 = vmatprep.subr.bf16.mxu0 0
        %874 = vmatpush1.bf16.msra.mxu0 0
        %875 = vmatprep.subr.bf16.mxu0 0
        %876 = vmatpush1.bf16.msra.mxu0 0
        %877 = vmatprep.subr.bf16.mxu0 0
        %878 = vmatpush1.bf16.msra.mxu0 0
        %879 = vmatprep.subr.bf16.mxu0 0
        %880 = vmatpush1.bf16.msra.mxu0 %v863
        %881 = vmatprep.subr.bf16.mxu0 0
        %882 = vmatpush2.bf16.msra.mxu0 0
        %883 = vmatprep.subr.bf16.mxu0 0
        %884 = vmatpush2.bf16.msra.mxu0 0
        %885 = vmatprep.subr.bf16.mxu0 0
        %886 = vmatpush2.bf16.msra.mxu0 0
        %887 = vmatprep.subr.bf16.mxu0 0
        %888 = vmatpush2.bf16.msra.mxu0 0
        %889 = vmatprep.subr.bf16.mxu0 0
        %890 = vmatpush2.bf16.msra.mxu0 0
        %891 = vmatprep.subr.bf16.mxu0 0
        %892 = vmatpush2.bf16.msra.mxu0 0
        %893 = vmatprep.subr.bf16.mxu0 0
        %894 = vmatpush2.bf16.msra.mxu0 0
        %895 = vmatprep.subr.bf16.mxu0 0
        %896 = vmatpush2.bf16.msra.mxu0 0
        %897 = vmatprep.mubr.bf16.mxu0 0
        %898 = vmatmul.mubr.bf16.gmra.mxu0 %v859
        %v899 = vpop.f32.mrf.mxu0
        %v900 = vadd.f32 0.0, %v899
        %v901 = vpop.f32.mrf.mxu0
        %v902 = vpop.f32.mrf.mxu0
        %v903 = vpop.f32.mrf.mxu0
        %904 = vdwg.mxu0
        %v905 = vpack.c.bf16 %v900, %v900
        %v906 = vld [vmem:[#allocation10] sm:$0xf]
        %v907 = vld [vmem:[#allocation10 + $0x4] sm:$0xf]
        %v908 = vld [vmem:[#allocation10 + $0x8] sm:$0xf]
        %v909 = vld [vmem:[#allocation10 + $0xc] sm:$0xf]
        %v914 = vunpack.c.l.b16 %v906
        %v915 = vunpack.c.l.b16 %v907
        %v916 = vunpack.c.l.b16 %v908
        %v917 = vunpack.c.l.b16 %v909
        %v918 = vpack.c.b16 %v915, %v914
        %v919 = vpack.c.b16 %v917, %v916
        %v923 = vsel %vm797, %v905, 0
        %925 = vmatprep.subr.bf16.mxu0 0
        %926 = vmatpush1.bf16.msra.mxu0 0
        %927 = vmatprep.subr.bf16.mxu0 0
        %928 = vmatpush1.bf16.msra.mxu0 0
        %929 = vmatprep.subr.bf16.mxu0 0
        %930 = vmatpush1.bf16.msra.mxu0 0
        %931 = vmatprep.subr.bf16.mxu0 0
        %932 = vmatpush1.bf16.msra.mxu0 0
        %933 = vmatprep.subr.bf16.mxu0 0
        %934 = vmatpush1.bf16.msra.mxu0 0
        %935 = vmatprep.subr.bf16.mxu0 0
        %936 = vmatpush1.bf16.msra.mxu0 0
        %937 = vmatprep.subr.bf16.mxu0 0
        %938 = vmatpush1.bf16.msra.mxu0 %v919
        %939 = vmatprep.subr.bf16.mxu0 0
        %940 = vmatpush1.bf16.msra.mxu0 %v918
        %941 = vmatprep.subr.bf16.mxu0 0
        %942 = vmatpush2.bf16.msra.mxu0 0
        %943 = vmatprep.subr.bf16.mxu0 0
        %944 = vmatpush2.bf16.msra.mxu0 0
        %945 = vmatprep.subr.bf16.mxu0 0
        %946 = vmatpush2.bf16.msra.mxu0 0
        %947 = vmatprep.subr.bf16.mxu0 0
        %948 = vmatpush2.bf16.msra.mxu0 0
        %949 = vmatprep.subr.bf16.mxu0 0
        %950 = vmatpush2.bf16.msra.mxu0 0
        %951 = vmatprep.subr.bf16.mxu0 0
        %952 = vmatpush2.bf16.msra.mxu0 0
        %953 = vmatprep.subr.bf16.mxu0 0
        %954 = vmatpush2.bf16.msra.mxu0 0
        %955 = vmatprep.subr.bf16.mxu0 0
        %956 = vmatpush2.bf16.msra.mxu0 0
        %957 = vmatprep.mubr.bf16.mxu0 0
        %958 = vmatmul.mubr.bf16.gmra.mxu0 %v923
        %v959 = vpop.f32.mrf.mxu0
        %v960 = vadd.f32 0.0, %v959
        %v961 = vpop.f32.mrf.mxu0
        %v962 = vpop.f32.mrf.mxu0
        %v963 = vpop.f32.mrf.mxu0
        %964 = vdwg.mxu0
        %v965 = vadd.f32 %v790, %v960
        %967 = vrot.lane.b32.xlu0 %v780, 96
        %v968 = vpop.permute.xlu0 %967
        %970 = vrot.lane.b32.xlu0 %v781, 96
        %v971 = vpop.permute.xlu0 %970
        %v973 = vsel %vm797, %v968, 0
        %v976 = vsel %vm797, %v971, 0
        %978 = vmatprep.subr.bf16.mxu0 0
        %979 = vmatpush1.bf16.xpose.msra.mxu0 0
        %980 = vmatprep.subr.bf16.mxu0 0
        %981 = vmatpush1.bf16.xpose.msra.mxu0 0
        %982 = vmatprep.subr.bf16.mxu0 0
        %983 = vmatpush1.bf16.xpose.msra.mxu0 0
        %984 = vmatprep.subr.bf16.mxu0 0
        %985 = vmatpush1.bf16.xpose.msra.mxu0 0
        %986 = vmatprep.subr.bf16.mxu0 0
        %987 = vmatpush1.bf16.xpose.msra.mxu0 0
        %988 = vmatprep.subr.bf16.mxu0 0
        %989 = vmatpush1.bf16.xpose.msra.mxu0 0
        %990 = vmatprep.subr.bf16.mxu0 0
        %991 = vmatpush1.bf16.xpose.msra.mxu0 0
        %992 = vmatprep.subr.bf16.mxu0 0
        %993 = vmatpush1.bf16.xpose.msra.mxu0 %v976
        %994 = vmatprep.subr.bf16.mxu0 0
        %995 = vmatpush2.bf16.xpose.msra.mxu0 0
        %996 = vmatprep.subr.bf16.mxu0 0
        %997 = vmatpush2.bf16.xpose.msra.mxu0 0
        %998 = vmatprep.subr.bf16.mxu0 0
        %999 = vmatpush2.bf16.xpose.msra.mxu0 0
        %1000 = vmatprep.subr.bf16.mxu0 0
        %1001 = vmatpush2.bf16.xpose.msra.mxu0 0
        %1002 = vmatprep.subr.bf16.mxu0 0
        %1003 = vmatpush2.bf16.xpose.msra.mxu0 0
        %1004 = vmatprep.subr.bf16.mxu0 0
        %1005 = vmatpush2.bf16.xpose.msra.mxu0 0
        %1006 = vmatprep.subr.bf16.mxu0 0
        %1007 = vmatpush2.bf16.xpose.msra.mxu0 0
        %1008 = vmatprep.subr.bf16.mxu0 0
        %1009 = vmatpush2.bf16.xpose.msra.mxu0 0
        %1010 = vmatprep.mubr.bf16.mxu0 0
        %1011 = vmatmul.mubr.bf16.gmra.mxu0 %v973
        %v1012 = vpop.f32.mrf.mxu0
        %v1013 = vadd.f32 %v795, %v1012
        %v1014 = vpop.f32.mrf.mxu0
        %v1015 = vpop.f32.mrf.mxu0
        %v1016 = vpop.f32.mrf.mxu0
        %1017 = vdwg.mxu0
        %v1018 = vsel %vm844, %v1013, -inf
        %1019 = vmax.xlane.f32.xlu0 %v1018
        %v1020 = vpop.xlane.xlu0 %1019
        %v1021 = vsub.f32 %v1013, %v1020
        %v1022 = vmul.f32 %v1021, 1.442695
        %v1023 = vpow.pop %v1022
        %v1024 = vsel %vm844, %v1023, 0.0
        %1025 = vadd.xlane.f32.xlu0 %v1024
        %v1026 = vpop.xlane.xlu0 %1025
        %v1027 = vrcp.pop %v1026
        %v1028 = vmul.f32 1.0, %v1027
        %v1029 = vmul.f32 %v1023, %v1028
        %v1030 = vpack.c.bf16 %v1029, %v1029
        %1032 = vrot.lane.b32.xlu0 %v782, 96
        %v1033 = vpop.permute.xlu0 %1032
        %v1035 = vsel %vm844, %v1030, 0
        %v1038 = vsel %vm861, %v1033, 0
        %1040 = vmatprep.subr.bf16.mxu0 0
        %1041 = vmatpush1.bf16.msra.mxu0 0
        %1042 = vmatprep.subr.bf16.mxu0 0
        %1043 = vmatpush1.bf16.msra.mxu0 0
        %1044 = vmatprep.subr.bf16.mxu0 0
        %1045 = vmatpush1.bf16.msra.mxu0 0
        %1046 = vmatprep.subr.bf16.mxu0 0
        %1047 = vmatpush1.bf16.msra.mxu0 0
        %1048 = vmatprep.subr.bf16.mxu0 0
        %1049 = vmatpush1.bf16.msra.mxu0 0
        %1050 = vmatprep.subr.bf16.mxu0 0
        %1051 = vmatpush1.bf16.msra.mxu0 0
        %1052 = vmatprep.subr.bf16.mxu0 0
        %1053 = vmatpush1.bf16.msra.mxu0 0
        %1054 = vmatprep.subr.bf16.mxu0 0
        %1055 = vmatpush1.bf16.msra.mxu0 %v1038
        %1056 = vmatprep.subr.bf16.mxu0 0
        %1057 = vmatpush2.bf16.msra.mxu0 0
        %1058 = vmatprep.subr.bf16.mxu0 0
        %1059 = vmatpush2.bf16.msra.mxu0 0
        %1060 = vmatprep.subr.bf16.mxu0 0
        %1061 = vmatpush2.bf16.msra.mxu0 0
        %1062 = vmatprep.subr.bf16.mxu0 0
        %1063 = vmatpush2.bf16.msra.mxu0 0
        %1064 = vmatprep.subr.bf16.mxu0 0
        %1065 = vmatpush2.bf16.msra.mxu0 0
        %1066 = vmatprep.subr.bf16.mxu0 0
        %1067 = vmatpush2.bf16.msra.mxu0 0
        %1068 = vmatprep.subr.bf16.mxu0 0
        %1069 = vmatpush2.bf16.msra.mxu0 0
        %1070 = vmatprep.subr.bf16.mxu0 0
        %1071 = vmatpush2.bf16.msra.mxu0 0
        %1072 = vmatprep.mubr.bf16.mxu0 0
        %1073 = vmatmul.mubr.bf16.gmra.mxu0 %v1035
        %v1074 = vpop.f32.mrf.mxu0
        %v1075 = vadd.f32 0.0, %v1074
        %v1076 = vpop.f32.mrf.mxu0
        %v1077 = vpop.f32.mrf.mxu0
        %v1078 = vpop.f32.mrf.mxu0
        %1079 = vdwg.mxu0
        %v1080 = vpack.c.bf16 %v1075, %v1075
        %v1081 = vld [vmem:[#allocation10 + $0x10] sm:$0xf]
        %v1082 = vld [vmem:[#allocation10 + $0x14] sm:$0xf]
        %v1083 = vld [vmem:[#allocation10 + $0x18] sm:$0xf]
        %v1084 = vld [vmem:[#allocation10 + $0x1c] sm:$0xf]
        %v1089 = vunpack.c.l.b16 %v1081
        %v1090 = vunpack.c.l.b16 %v1082
        %v1091 = vunpack.c.l.b16 %v1083
        %v1092 = vunpack.c.l.b16 %v1084
        %v1093 = vpack.c.b16 %v1090, %v1089
        %v1094 = vpack.c.b16 %v1092, %v1091
        %v1098 = vsel %vm797, %v1080, 0
        %1100 = vmatprep.subr.bf16.mxu0 0
        %1101 = vmatpush1.bf16.msra.mxu0 0
        %1102 = vmatprep.subr.bf16.mxu0 0
        %1103 = vmatpush1.bf16.msra.mxu0 0
        %1104 = vmatprep.subr.bf16.mxu0 0
        %1105 = vmatpush1.bf16.msra.mxu0 0
        %1106 = vmatprep.subr.bf16.mxu0 0
        %1107 = vmatpush1.bf16.msra.mxu0 0
        %1108 = vmatprep.subr.bf16.mxu0 0
        %1109 = vmatpush1.bf16.msra.mxu0 0
        %1110 = vmatprep.subr.bf16.mxu0 0
        %1111 = vmatpush1.bf16.msra.mxu0 0
        %1112 = vmatprep.subr.bf16.mxu0 0
        %1113 = vmatpush1.bf16.msra.mxu0 %v1094
        %1114 = vmatprep.subr.bf16.mxu0 0
        %1115 = vmatpush1.bf16.msra.mxu0 %v1093
        %1116 = vmatprep.subr.bf16.mxu0 0
        %1117 = vmatpush2.bf16.msra.mxu0 0
        %1118 = vmatprep.subr.bf16.mxu0 0
        %1119 = vmatpush2.bf16.msra.mxu0 0
        %1120 = vmatprep.subr.bf16.mxu0 0
        %1121 = vmatpush2.bf16.msra.mxu0 0
        %1122 = vmatprep.subr.bf16.mxu0 0
        %1123 = vmatpush2.bf16.msra.mxu0 0
        %1124 = vmatprep.subr.bf16.mxu0 0
        %1125 = vmatpush2.bf16.msra.mxu0 0
        %1126 = vmatprep.subr.bf16.mxu0 0
        %1127 = vmatpush2.bf16.msra.mxu0 0
        %1128 = vmatprep.subr.bf16.mxu0 0
        %1129 = vmatpush2.bf16.msra.mxu0 0
        %1130 = vmatprep.subr.bf16.mxu0 0
        %1131 = vmatpush2.bf16.msra.mxu0 0
        %1132 = vmatprep.mubr.bf16.mxu0 0
        %1133 = vmatmul.mubr.bf16.gmra.mxu0 %v1098
        %v1134 = vpop.f32.mrf.mxu0
        %v1135 = vadd.f32 0.0, %v1134
        %v1136 = vpop.f32.mrf.mxu0
        %v1137 = vpop.f32.mrf.mxu0
        %v1138 = vpop.f32.mrf.mxu0
        %1139 = vdwg.mxu0
        %v1140 = vadd.f32 %v965, %v1135
        %1141 = vrot.lane.b32.xlu0 %v780, 64
        %v1142 = vpop.permute.xlu0 %1141
        %1143 = vrot.lane.b32.xlu0 %v781, 64
        %v1144 = vpop.permute.xlu0 %1143
        %v1146 = vsel %vm797, %v1142, 0
        %v1149 = vsel %vm797, %v1144, 0
        %1151 = vmatprep.subr.bf16.mxu0 0
        %1152 = vmatpush1.bf16.xpose.msra.mxu0 0
        %1153 = vmatprep.subr.bf16.mxu0 0
        %1154 = vmatpush1.bf16.xpose.msra.mxu0 0
        %1155 = vmatprep.subr.bf16.mxu0 0
        %1156 = vmatpush1.bf16.xpose.msra.mxu0 0
        %1157 = vmatprep.subr.bf16.mxu0 0
        %1158 = vmatpush1.bf16.xpose.msra.mxu0 0
        %1159 = vmatprep.subr.bf16.mxu0 0
        %1160 = vmatpush1.bf16.xpose.msra.mxu0 0
        %1161 = vmatprep.subr.bf16.mxu0 0
        %1162 = vmatpush1.bf16.xpose.msra.mxu0 0
        %1163 = vmatprep.subr.bf16.mxu0 0
        %1164 = vmatpush1.bf16.xpose.msra.mxu0 0
        %1165 = vmatprep.subr.bf16.mxu0 0
        %1166 = vmatpush1.bf16.xpose.msra.mxu0 %v1149
        %1167 = vmatprep.subr.bf16.mxu0 0
        %1168 = vmatpush2.bf16.xpose.msra.mxu0 0
        %1169 = vmatprep.subr.bf16.mxu0 0
        %1170 = vmatpush2.bf16.xpose.msra.mxu0 0
        %1171 = vmatprep.subr.bf16.mxu0 0
        %1172 = vmatpush2.bf16.xpose.msra.mxu0 0
        %1173 = vmatprep.subr.bf16.mxu0 0
        %1174 = vmatpush2.bf16.xpose.msra.mxu0 0
        %1175 = vmatprep.subr.bf16.mxu0 0
        %1176 = vmatpush2.bf16.xpose.msra.mxu0 0
        %1177 = vmatprep.subr.bf16.mxu0 0
        %1178 = vmatpush2.bf16.xpose.msra.mxu0 0
        %1179 = vmatprep.subr.bf16.mxu0 0
        %1180 = vmatpush2.bf16.xpose.msra.mxu0 0
        %1181 = vmatprep.subr.bf16.mxu0 0
        %1182 = vmatpush2.bf16.xpose.msra.mxu0 0
        %1183 = vmatprep.mubr.bf16.mxu0 0
        %1184 = vmatmul.mubr.bf16.gmra.mxu0 %v1146
        %v1185 = vpop.f32.mrf.mxu0
        %v1186 = vadd.f32 %v795, %v1185
        %v1187 = vpop.f32.mrf.mxu0
        %v1188 = vpop.f32.mrf.mxu0
        %v1189 = vpop.f32.mrf.mxu0
        %1190 = vdwg.mxu0
        %v1191 = vsel %vm844, %v1186, -inf
        %1192 = vmax.xlane.f32.xlu0 %v1191
        %v1193 = vpop.xlane.xlu0 %1192
        %v1194 = vsub.f32 %v1186, %v1193
        %v1195 = vmul.f32 %v1194, 1.442695
        %v1196 = vpow.pop %v1195
        %v1197 = vsel %vm844, %v1196, 0.0
        %1198 = vadd.xlane.f32.xlu0 %v1197
        %v1199 = vpop.xlane.xlu0 %1198
        %v1200 = vrcp.pop %v1199
        %v1201 = vmul.f32 1.0, %v1200
        %v1202 = vmul.f32 %v1196, %v1201
        %v1203 = vpack.c.bf16 %v1202, %v1202
        %1204 = vrot.lane.b32.xlu0 %v782, 64
        %v1205 = vpop.permute.xlu0 %1204
        %v1207 = vsel %vm844, %v1203, 0
        %v1210 = vsel %vm861, %v1205, 0
        %1212 = vmatprep.subr.bf16.mxu0 0
        %1213 = vmatpush1.bf16.msra.mxu0 0
        %1214 = vmatprep.subr.bf16.mxu0 0
        %1215 = vmatpush1.bf16.msra.mxu0 0
        %1216 = vmatprep.subr.bf16.mxu0 0
        %1217 = vmatpush1.bf16.msra.mxu0 0
        %1218 = vmatprep.subr.bf16.mxu0 0
        %1219 = vmatpush1.bf16.msra.mxu0 0
        %1220 = vmatprep.subr.bf16.mxu0 0
        %1221 = vmatpush1.bf16.msra.mxu0 0
        %1222 = vmatprep.subr.bf16.mxu0 0
        %1223 = vmatpush1.bf16.msra.mxu0 0
        %1224 = vmatprep.subr.bf16.mxu0 0
        %1225 = vmatpush1.bf16.msra.mxu0 0
        %1226 = vmatprep.subr.bf16.mxu0 0
        %1227 = vmatpush1.bf16.msra.mxu0 %v1210
        %1228 = vmatprep.subr.bf16.mxu0 0
        %1229 = vmatpush2.bf16.msra.mxu0 0
        %1230 = vmatprep.subr.bf16.mxu0 0
        %1231 = vmatpush2.bf16.msra.mxu0 0
        %1232 = vmatprep.subr.bf16.mxu0 0
        %1233 = vmatpush2.bf16.msra.mxu0 0
        %1234 = vmatprep.subr.bf16.mxu0 0
        %1235 = vmatpush2.bf16.msra.mxu0 0
        %1236 = vmatprep.subr.bf16.mxu0 0
        %1237 = vmatpush2.bf16.msra.mxu0 0
        %1238 = vmatprep.subr.bf16.mxu0 0
        %1239 = vmatpush2.bf16.msra.mxu0 0
        %1240 = vmatprep.subr.bf16.mxu0 0
        %1241 = vmatpush2.bf16.msra.mxu0 0
        %1242 = vmatprep.subr.bf16.mxu0 0
        %1243 = vmatpush2.bf16.msra.mxu0 0
        %1244 = vmatprep.mubr.bf16.mxu0 0
        %1245 = vmatmul.mubr.bf16.gmra.mxu0 %v1207
        %v1246 = vpop.f32.mrf.mxu0
        %v1247 = vadd.f32 0.0, %v1246
        %v1248 = vpop.f32.mrf.mxu0
        %v1249 = vpop.f32.mrf.mxu0
        %v1250 = vpop.f32.mrf.mxu0
        %1251 = vdwg.mxu0
        %v1252 = vpack.c.bf16 %v1247, %v1247
        %v1253 = vld [vmem:[#allocation10 + $0x20] sm:$0xf]
        %v1254 = vld [vmem:[#allocation10 + $0x24] sm:$0xf]
        %v1255 = vld [vmem:[#allocation10 + $0x28] sm:$0xf]
        %v1256 = vld [vmem:[#allocation10 + $0x2c] sm:$0xf]
        %v1261 = vunpack.c.l.b16 %v1253
        %v1262 = vunpack.c.l.b16 %v1254
        %v1263 = vunpack.c.l.b16 %v1255
        %v1264 = vunpack.c.l.b16 %v1256
        %v1265 = vpack.c.b16 %v1262, %v1261
        %v1266 = vpack.c.b16 %v1264, %v1263
        %v1270 = vsel %vm797, %v1252, 0
        %1272 = vmatprep.subr.bf16.mxu0 0
        %1273 = vmatpush1.bf16.msra.mxu0 0
        %1274 = vmatprep.subr.bf16.mxu0 0
        %1275 = vmatpush1.bf16.msra.mxu0 0
        %1276 = vmatprep.subr.bf16.mxu0 0
        %1277 = vmatpush1.bf16.msra.mxu0 0
        %1278 = vmatprep.subr.bf16.mxu0 0
        %1279 = vmatpush1.bf16.msra.mxu0 0
        %1280 = vmatprep.subr.bf16.mxu0 0
        %1281 = vmatpush1.bf16.msra.mxu0 0
        %1282 = vmatprep.subr.bf16.mxu0 0
        %1283 = vmatpush1.bf16.msra.mxu0 0
        %1284 = vmatprep.subr.bf16.mxu0 0
        %1285 = vmatpush1.bf16.msra.mxu0 %v1266
        %1286 = vmatprep.subr.bf16.mxu0 0
        %1287 = vmatpush1.bf16.msra.mxu0 %v1265
        %1288 = vmatprep.subr.bf16.mxu0 0
        %1289 = vmatpush2.bf16.msra.mxu0 0
        %1290 = vmatprep.subr.bf16.mxu0 0
        %1291 = vmatpush2.bf16.msra.mxu0 0
        %1292 = vmatprep.subr.bf16.mxu0 0
        %1293 = vmatpush2.bf16.msra.mxu0 0
        %1294 = vmatprep.subr.bf16.mxu0 0
        %1295 = vmatpush2.bf16.msra.mxu0 0
        %1296 = vmatprep.subr.bf16.mxu0 0
        %1297 = vmatpush2.bf16.msra.mxu0 0
        %1298 = vmatprep.subr.bf16.mxu0 0
        %1299 = vmatpush2.bf16.msra.mxu0 0
        %1300 = vmatprep.subr.bf16.mxu0 0
        %1301 = vmatpush2.bf16.msra.mxu0 0
        %1302 = vmatprep.subr.bf16.mxu0 0
        %1303 = vmatpush2.bf16.msra.mxu0 0
        %1304 = vmatprep.mubr.bf16.mxu0 0
        %1305 = vmatmul.mubr.bf16.gmra.mxu0 %v1270
        %v1306 = vpop.f32.mrf.mxu0
        %v1307 = vadd.f32 0.0, %v1306
        %v1308 = vpop.f32.mrf.mxu0
        %v1309 = vpop.f32.mrf.mxu0
        %v1310 = vpop.f32.mrf.mxu0
        %1311 = vdwg.mxu0
        %v1312 = vadd.f32 %v1140, %v1307
        %1313 = vrot.lane.b32.xlu0 %v780, 32
        %v1314 = vpop.permute.xlu0 %1313
        %1315 = vrot.lane.b32.xlu0 %v781, 32
        %v1316 = vpop.permute.xlu0 %1315
        %v1318 = vsel %vm797, %v1314, 0
        %v1321 = vsel %vm797, %v1316, 0
        %1323 = vmatprep.subr.bf16.mxu0 0
        %1324 = vmatpush1.bf16.xpose.msra.mxu0 0
        %1325 = vmatprep.subr.bf16.mxu0 0
        %1326 = vmatpush1.bf16.xpose.msra.mxu0 0
        %1327 = vmatprep.subr.bf16.mxu0 0
        %1328 = vmatpush1.bf16.xpose.msra.mxu0 0
        %1329 = vmatprep.subr.bf16.mxu0 0
        %1330 = vmatpush1.bf16.xpose.msra.mxu0 0
        %1331 = vmatprep.subr.bf16.mxu0 0
        %1332 = vmatpush1.bf16.xpose.msra.mxu0 0
        %1333 = vmatprep.subr.bf16.mxu0 0
        %1334 = vmatpush1.bf16.xpose.msra.mxu0 0
        %1335 = vmatprep.subr.bf16.mxu0 0
        %1336 = vmatpush1.bf16.xpose.msra.mxu0 0
        %1337 = vmatprep.subr.bf16.mxu0 0
        %1338 = vmatpush1.bf16.xpose.msra.mxu0 %v1321
        %1339 = vmatprep.subr.bf16.mxu0 0
        %1340 = vmatpush2.bf16.xpose.msra.mxu0 0
        %1341 = vmatprep.subr.bf16.mxu0 0
        %1342 = vmatpush2.bf16.xpose.msra.mxu0 0
        %1343 = vmatprep.subr.bf16.mxu0 0
        %1344 = vmatpush2.bf16.xpose.msra.mxu0 0
        %1345 = vmatprep.subr.bf16.mxu0 0
        %1346 = vmatpush2.bf16.xpose.msra.mxu0 0
        %1347 = vmatprep.subr.bf16.mxu0 0
        %1348 = vmatpush2.bf16.xpose.msra.mxu0 0
        %1349 = vmatprep.subr.bf16.mxu0 0
        %1350 = vmatpush2.bf16.xpose.msra.mxu0 0
        %1351 = vmatprep.subr.bf16.mxu0 0
        %1352 = vmatpush2.bf16.xpose.msra.mxu0 0
        %1353 = vmatprep.subr.bf16.mxu0 0
        %1354 = vmatpush2.bf16.xpose.msra.mxu0 0
        %1355 = vmatprep.mubr.bf16.mxu0 0
        %1356 = vmatmul.mubr.bf16.gmra.mxu0 %v1318
        %v1357 = vpop.f32.mrf.mxu0
        %v1358 = vadd.f32 %v795, %v1357
        %v1359 = vpop.f32.mrf.mxu0
        %v1360 = vpop.f32.mrf.mxu0
        %v1361 = vpop.f32.mrf.mxu0
        %1362 = vdwg.mxu0
        %v1363 = vsel %vm844, %v1358, -inf
        %1364 = vmax.xlane.f32.xlu0 %v1363
        %v1365 = vpop.xlane.xlu0 %1364
        %v1366 = vsub.f32 %v1358, %v1365
        %v1367 = vmul.f32 %v1366, 1.442695
        %v1368 = vpow.pop %v1367
        %v1369 = vsel %vm844, %v1368, 0.0
        %1370 = vadd.xlane.f32.xlu0 %v1369
        %v1371 = vpop.xlane.xlu0 %1370
        %v1372 = vrcp.pop %v1371
        %v1373 = vmul.f32 1.0, %v1372
        %v1374 = vmul.f32 %v1368, %v1373
        %v1375 = vpack.c.bf16 %v1374, %v1374
        %1376 = vrot.lane.b32.xlu0 %v782, 32
        %v1377 = vpop.permute.xlu0 %1376
        %v1379 = vsel %vm844, %v1375, 0
        %v1382 = vsel %vm861, %v1377, 0
        %1384 = vmatprep.subr.bf16.mxu0 0
        %1385 = vmatpush1.bf16.msra.mxu0 0
        %1386 = vmatprep.subr.bf16.mxu0 0
        %1387 = vmatpush1.bf16.msra.mxu0 0
        %1388 = vmatprep.subr.bf16.mxu0 0
        %1389 = vmatpush1.bf16.msra.mxu0 0
        %1390 = vmatprep.subr.bf16.mxu0 0
        %1391 = vmatpush1.bf16.msra.mxu0 0
        %1392 = vmatprep.subr.bf16.mxu0 0
        %1393 = vmatpush1.bf16.msra.mxu0 0
        %1394 = vmatprep.subr.bf16.mxu0 0
        %1395 = vmatpush1.bf16.msra.mxu0 0
        %1396 = vmatprep.subr.bf16.mxu0 0
        %1397 = vmatpush1.bf16.msra.mxu0 0
        %1398 = vmatprep.subr.bf16.mxu0 0
        %1399 = vmatpush1.bf16.msra.mxu0 %v1382
        %1400 = vmatprep.subr.bf16.mxu0 0
        %1401 = vmatpush2.bf16.msra.mxu0 0
        %1402 = vmatprep.subr.bf16.mxu0 0
        %1403 = vmatpush2.bf16.msra.mxu0 0
        %1404 = vmatprep.subr.bf16.mxu0 0
        %1405 = vmatpush2.bf16.msra.mxu0 0
        %1406 = vmatprep.subr.bf16.mxu0 0
        %1407 = vmatpush2.bf16.msra.mxu0 0
        %1408 = vmatprep.subr.bf16.mxu0 0
        %1409 = vmatpush2.bf16.msra.mxu0 0
        %1410 = vmatprep.subr.bf16.mxu0 0
        %1411 = vmatpush2.bf16.msra.mxu0 0
        %1412 = vmatprep.subr.bf16.mxu0 0
        %1413 = vmatpush2.bf16.msra.mxu0 0
        %1414 = vmatprep.subr.bf16.mxu0 0
        %1415 = vmatpush2.bf16.msra.mxu0 0
        %1416 = vmatprep.mubr.bf16.mxu0 0
        %1417 = vmatmul.mubr.bf16.gmra.mxu0 %v1379
        %v1418 = vpop.f32.mrf.mxu0
        %v1419 = vadd.f32 0.0, %v1418
        %v1420 = vpop.f32.mrf.mxu0
        %v1421 = vpop.f32.mrf.mxu0
        %v1422 = vpop.f32.mrf.mxu0
        %1423 = vdwg.mxu0
        %v1424 = vpack.c.bf16 %v1419, %v1419
        %v1425 = vld [vmem:[#allocation10 + $0x30] sm:$0xf]
        %v1426 = vld [vmem:[#allocation10 + $0x34] sm:$0xf]
        %v1427 = vld [vmem:[#allocation10 + $0x38] sm:$0xf]
        %v1428 = vld [vmem:[#allocation10 + $0x3c] sm:$0xf]
        %v1433 = vunpack.c.l.b16 %v1425
        %v1434 = vunpack.c.l.b16 %v1426
        %v1435 = vunpack.c.l.b16 %v1427
        %v1436 = vunpack.c.l.b16 %v1428
        %v1437 = vpack.c.b16 %v1434, %v1433
        %v1438 = vpack.c.b16 %v1436, %v1435
        %v1442 = vsel %vm797, %v1424, 0
        %1444 = vmatprep.subr.bf16.mxu0 0
        %1445 = vmatpush1.bf16.msra.mxu0 0
        %1446 = vmatprep.subr.bf16.mxu0 0
        %1447 = vmatpush1.bf16.msra.mxu0 0
        %1448 = vmatprep.subr.bf16.mxu0 0
        %1449 = vmatpush1.bf16.msra.mxu0 0
        %1450 = vmatprep.subr.bf16.mxu0 0
        %1451 = vmatpush1.bf16.msra.mxu0 0
        %1452 = vmatprep.subr.bf16.mxu0 0
        %1453 = vmatpush1.bf16.msra.mxu0 0
        %1454 = vmatprep.subr.bf16.mxu0 0
        %1455 = vmatpush1.bf16.msra.mxu0 0
        %1456 = vmatprep.subr.bf16.mxu0 0
        %1457 = vmatpush1.bf16.msra.mxu0 %v1438
        %1458 = vmatprep.subr.bf16.mxu0 0
        %1459 = vmatpush1.bf16.msra.mxu0 %v1437
        %1460 = vmatprep.subr.bf16.mxu0 0
        %1461 = vmatpush2.bf16.msra.mxu0 0
        %1462 = vmatprep.subr.bf16.mxu0 0
        %1463 = vmatpush2.bf16.msra.mxu0 0
        %1464 = vmatprep.subr.bf16.mxu0 0
        %1465 = vmatpush2.bf16.msra.mxu0 0
        %1466 = vmatprep.subr.bf16.mxu0 0
        %1467 = vmatpush2.bf16.msra.mxu0 0
        %1468 = vmatprep.subr.bf16.mxu0 0
        %1469 = vmatpush2.bf16.msra.mxu0 0
        %1470 = vmatprep.subr.bf16.mxu0 0
        %1471 = vmatpush2.bf16.msra.mxu0 0
        %1472 = vmatprep.subr.bf16.mxu0 0
        %1473 = vmatpush2.bf16.msra.mxu0 0
        %1474 = vmatprep.subr.bf16.mxu0 0
        %1475 = vmatpush2.bf16.msra.mxu0 0
        %1476 = vmatprep.mubr.bf16.mxu0 0
        %1477 = vmatmul.mubr.bf16.gmra.mxu0 %v1442
        %v1478 = vpop.f32.mrf.mxu0
        %v1479 = vadd.f32 0.0, %v1478
        %v1480 = vpop.f32.mrf.mxu0
        %v1481 = vpop.f32.mrf.mxu0
        %v1482 = vpop.f32.mrf.mxu0
        %1483 = vdwg.mxu0
        %v1484 = vadd.f32 %v1312, %v1479
        %1485 = vadd.xlane.f32.xlu0 %v1484
        %v1486 = vpop.xlane.xlu0 %1485
        %v1487 = vrcp.pop 128.0
        %v1488 = vmul.f32 %v1486, %v1487
        %v1489 = vsub.f32 %v1484, %v1488
        %v1490 = vmul.f32 %v1489, %v1489
        %1491 = vadd.xlane.f32.xlu0 %v1490
        %v1492 = vpop.xlane.xlu0 %1491
        %v1493 = vmul.f32 %v1492, %v1487
        %v1494 = vadd.f32 %v1493, 1e-12
        %v1495 = vrsqrt.pop %v1494
        %v1496 = vmul.f32 %v1489, %v1495
        %v1497 = vld [vmem:[%s9] sm:$0x1]
        %v1499 = vlaneseq
        %v1500 = vshrl.u32 %v1499, 7
        %v1501 = vsub.s32 0, %v1500
        %v1502 = vrot.slane %v1497, %v1501
        %v1504 = vmul.f32 %v1496, %v1502
        %v1505 = vld [vmem:[%s10] sm:$0x1]
        %v1507 = vlaneseq
        %v1508 = vshrl.u32 %v1507, 7
        %v1509 = vsub.s32 0, %v1508
        %v1510 = vrot.slane %v1505, %v1509
        %v1512 = vadd.f32 %v1504, %v1510
        %1513 = vst [vmem:[%s509] sm:$0xff] %v1512
        %s1514 = sand.u32 %s302, 1
        %s1515 = scalar_lea.sflag [#allocation4], %s1514
        %s1516 = sand.u32 %s302, 1
        %s1517 = smul.addr %s1516, 8
        %s1518 = scalar_lea.vmem [#allocation11], %s1517
        // Predicated region
        $region85: #{tpu_custom_call.1} parent=63 // pred_check
          %p1519 = pneg %p312
        $region86: #{tpu_custom_call.1} parent=63 // pred_check_branch
          %1521 = sbr.rel (%p1519) target = $region88
        $region87: #{tpu_custom_call.1} parent=63 // pred_region
          %s1523 = ssub.s32 128, 128
          %1524 = vsyncadd %s1515, %s1523
          %s1525 = sadd.s32 %s37, %s36
          %s1526 = smul.addr %s1525, 128
          %s1527 = scalar_lea.hbm %s11, %s1526
          %s1529 = sshll.u32 %s1518, 4
          %s1530 = int_to_ptr.vmem [resolvable:$true] %s1529
          %1532 = dma.vmem_to_hbm [thread:$0]  %s1530, 128, %s1527, %s1515
        $region88: #{tpu_custom_call.1} parent=63 // pred_fallthru
          _
      $region64: #{tpu_custom_call.1} parent=5 // pred_fallthru
        _
      %p1533 = scmp.le.s32.totalorder 2, %s27
      // Predicated region
      $region89: #{tpu_custom_call.1} parent=5 // pred_check
        %p1534 = pneg %p1533
      $region90: #{tpu_custom_call.1} parent=5 // pred_check_branch
        %1536 = sbr.rel (%p1534) target = $region92
      $region91: #{tpu_custom_call.1} parent=5 // pred_region
        %s1537 = ssub.s32 %s27, 2
        // Predicated region
        $region93: #{tpu_custom_call.1} parent=91 // pred_check
          %p1538 = pneg %p318
        $region94: #{tpu_custom_call.1} parent=91 // pred_check_branch
          %1540 = sbr.rel (%p1538) target = $region96
        $region95: #{tpu_custom_call.1} parent=91 // pred_region
          %s1541 = sand.u32 %s303, 1
          %s1542 = scalar_lea.sflag [#allocation4], %s1541
          %s1543 = sand.u32 %s303, 1
          %s1544 = smul.addr %s1543, 8
          %s1545 = scalar_lea.vmem [#allocation11], %s1544
          %1546 = dma.done %s1542, 128
        $region96: #{tpu_custom_call.1} parent=91 // pred_fallthru
          _
      $region92: #{tpu_custom_call.1} parent=5 // pred_fallthru
        _
    $region6: #{tpu_custom_call.1} parent=1 // loop_footer
      %s31 = sadd.s32 1, %s27
    $region7: #{tpu_custom_call.1} parent=1 // loop_footer_branch
      %26 = sbr.rel target = $region3
    $region8: #{tpu_custom_call.1} parent=1 // loop_exit
      _
    %1547 = vsyncpa [#allocation3], 1
    %s1548 = scalar_lea.sflag [#allocation3], 1
    %1549 = vsyncpa %s1548, 1
    %1550 = vsyncpa [#allocation6], 1
    %s1551 = scalar_lea.sflag [#allocation6], 1
    %1552 = vsyncpa %s1551, 1
    %1553 = vsyncpa [#allocation9], 1
    %1554 = vsyncpa [#allocation4], 1
    %s1555 = scalar_lea.sflag [#allocation4], 1
    %1556 = vsyncpa %s1555, 1

</llo_original>
